<compile_context>
chip_gen: v7x
topology: tpu7x:2x2x1
jax: 0.10.0
libtpu: 0.0.40
codegen_flags: <defaults>
</compile_context>

<pallas_src>
import jax
import jax.numpy as jnp
from jax.experimental import pallas as pl
from jax.experimental.pallas import tpu as pltpu


SIM_SCALE = 5.0
COS_EPS = 1e-8          # torch.nn.CosineSimilarity default eps
PAD_IDX = 0
OUT_LANES = 128         # lane-dense output width (unmasked vst)

_STEP_BYTES_FLOOR = 8 * 1024 * 1024   # target HBM bytes moved per grid step
_SUBLANE = {4: 8, 2: 16, 1: 32}


def _round_up(x, m):
    return ((x + m - 1) // m) * m


def _cdiv(a, b):
    return (a + b - 1) // b


def _physical_vmem_bytes():
    try:
        v = getattr(pltpu.get_tpu_info(), "vmem_capacity_bytes", None)
        if v:
            return int(v)
    except Exception:
        pass
    return 64 * 1024 * 1024          # conservative: v7x per-TC physical VMEM


def _vmem_limit_bytes():
    # <= 75% of physical VMEM (48 MiB on v7x's 64 MiB/TC), capped at 96 MiB on
    # 128 MiB parts — leaves headroom for compiler scratch, sems, output bufs.
    return int(min(_physical_vmem_bytes() * 3 // 4, 96 * 1024 * 1024))


def _input_vmem_budget():
    # bytes for the 2 inputs x 2 pipeline buffers of the streaming kernel
    return max(8 * 1024 * 1024, _vmem_limit_bytes() - 16 * 1024 * 1024)


def _pick_batch_tile(B, sublane):
    b_min = _round_up(B, sublane)
    if b_min <= sublane:
        return sublane
    if b_min <= 128:
        # >= 2 batch tiles so both v7x TensorCores get work on the "parallel"
        # axis; negligible cost on single-core v5e/v6e.
        return _round_up(_cdiv(b_min, 2), sublane)
    return 64   # grow ts (streamed), not tb (multiplies accumulators/epilogue)


def _pick_seq_tile(S_max, tb, D, itemsize):
    per_row = tb * D * itemsize                           # bytes / seq pos / input
    ts_floor = _cdiv(_STEP_BYTES_FLOOR // 2, per_row)     # per-step byte floor
    ts_cap = max(8, _input_vmem_budget() // (4 * per_row))  # 2 inputs x 2 bufs
    ts = max(8, min(max(ts_floor, 8), ts_cap))
    ts = _round_up(ts, 8)
    return min(ts, _round_up(S_max, 8))


# ------------------------- fused-gather kernel ---------------------------


def _avgsim_fused_kernel(ids1_ref, ids2_ref, lens_ref, tbl_ref, out_ref,
                         avg1_ref, avg2_ref):
    """grid = (batch_tiles,).  ids/lens live in SMEM, the table in VMEM."""
    i = pl.program_id(0)
    tb, D = avg1_ref.shape
    S1 = ids1_ref.shape[0]
    S2 = ids2_ref.shape[0]

    def sentence_avg(ids_ref, seq_len, col, n_tok):
        def body(s, acc):
            row = tbl_ref[ids_ref[s, col]]                    # (1, D) VMEM row
            # mask positions past the true length (robust even if the pad-token
            # embedding row is not exactly zero)
            return acc + jnp.where(s < n_tok, row, 0.0)
        tot = jax.lax.fori_loop(0, seq_len, body,
                                jnp.zeros((1, D), jnp.float32))
        return tot / n_tok.astype(jnp.float32)

    for bi in range(tb):                                      # static unroll
        col = i * tb + bi
        avg1_ref[pl.ds(bi, 1), :] = sentence_avg(ids1_ref, S1, col,
                                                 lens_ref[col, 0])
        avg2_ref[pl.ds(bi, 1), :] = sentence_avg(ids2_ref, S2, col,
                                                 lens_ref[col, 1])

    a1 = avg1_ref[...]
    a2 = avg2_ref[...]
    dot = jnp.sum(a1 * a2, axis=-1, keepdims=True)            # (tb, 1)
    n1 = jnp.sqrt(jnp.sum(a1 * a1, axis=-1, keepdims=True))
    n2 = jnp.sqrt(jnp.sum(a2 * a2, axis=-1, keepdims=True))
    score = (dot / jnp.maximum(n1 * n2, COS_EPS)) * SIM_SCALE
    out_ref[...] = jnp.broadcast_to(score, out_ref.shape)     # lane-dense store


def _avg_sim_fused(table, ids1, ids2, lens1, lens2, batch_tile=None):
    V, D = table.shape
    S1, B = ids1.shape
    S2 = ids2.shape[0]

    tb = _round_up(min(batch_tile or 8, 64), 8)
    b_pad = _round_up(B, tb)
    pad_cols = b_pad - B

    ids1_p = jnp.pad(ids1.astype(jnp.int32), ((0, 0), (0, pad_cols)),
                     constant_values=PAD_IDX)
    ids2_p = jnp.pad(ids2.astype(jnp.int32), ((0, 0), (0, pad_cols)),
                     constant_values=PAD_IDX)
    lens = jnp.round(jnp.stack([lens1, lens2], axis=1)).astype(jnp.int32)
    lens = jnp.pad(lens, ((0, pad_cols), (0, 0)), constant_values=1)
    tbl3 = table.astype(jnp.float32).reshape(V, 1, D)   # untiled row axis

    out = pl.pallas_call(
        _avgsim_fused_kernel,
        out_shape=jax.ShapeDtypeStruct((b_pad, OUT_LANES), jnp.float32),
        grid_spec=pltpu.PrefetchScalarGridSpec(
            num_scalar_prefetch=3,
            grid=(b_pad // tb,),
            in_specs=[
                # full table, constant block index -> copied to VMEM once
                pl.BlockSpec((V, 1, D), lambda i, s1, s2, ln: (0, 0, 0)),
            ],
            out_specs=pl.BlockSpec((tb, OUT_LANES),
                                   lambda i, s1, s2, ln: (i, 0)),
            scratch_shapes=[pltpu.VMEM((tb, D), jnp.float32),
                            pltpu.VMEM((tb, D), jnp.float32)],
        ),
        compiler_params=pltpu.CompilerParams(
            dimension_semantics=("parallel",),
            vmem_limit_bytes=_vmem_limit_bytes(),
        ),
    )(ids1_p, ids2_p, lens, tbl3)
    return out[:B, 0]


# --------------------------- streaming kernel ----------------------------


def _avgsim_stream_kernel(e1_ref, e2_ref, lens_ref, out_ref, acc1_ref, acc2_ref):
    """grid = (batch_tiles, seq_tiles); axis 1 is the seq reduction."""
    j = pl.program_id(1)

    @pl.when(j == 0)
    def _init():
        acc1_ref[...] = jnp.zeros_like(acc1_ref)
        acc2_ref[...] = jnp.zeros_like(acc2_ref)

    # raw per-sentence sums over this seq tile; f32 accumulation also for bf16
    acc1_ref[...] += jnp.sum(e1_ref[...].astype(jnp.float32), axis=0)
    acc2_ref[...] += jnp.sum(e2_ref[...].astype(jnp.float32), axis=0)

    @pl.when(j == pl.num_programs(1) - 1)
    def _finalize():
        s1 = acc1_ref[...]
        s2 = acc2_ref[...]
        dot = jnp.sum(s1 * s2, axis=-1, keepdims=True)          # (tb, 1)
        n1 = jnp.sqrt(jnp.sum(s1 * s1, axis=-1, keepdims=True))
        n2 = jnp.sqrt(jnp.sum(s2 * s2, axis=-1, keepdims=True))
        l = lens_ref[...]                                        # (tb, 2)
        # cosine is scale-invariant: the length divides survive only in the
        # eps clamp ->  dot(s1,s2) / max(||s1||*||s2||, eps*l1*l2)
        denom = jnp.maximum(n1 * n2, COS_EPS * l[:, 0:1] * l[:, 1:2])
        out_ref[...] = jnp.broadcast_to((dot / denom) * SIM_SCALE, out_ref.shape)


def _avg_sim_stream_call(e1, e2, lens, tb, ts):
    s_pad, b_pad, D = e1.shape
    grid = (b_pad // tb, s_pad // ts)
    return pl.pallas_call(
        _avgsim_stream_kernel,
        out_shape=jax.ShapeDtypeStruct((b_pad, OUT_LANES), jnp.float32),
        grid_spec=pltpu.PrefetchScalarGridSpec(
            num_scalar_prefetch=0,
            grid=grid,
            in_specs=[
                pl.BlockSpec((ts, tb, D), lambda i, j: (j, i, 0)),
                pl.BlockSpec((ts, tb, D), lambda i, j: (j, i, 0)),
                pl.BlockSpec((tb, 2), lambda i, j: (i, 0)),
            ],
            out_specs=pl.BlockSpec((tb, OUT_LANES), lambda i, j: (i, 0)),
            scratch_shapes=[pltpu.VMEM((tb, D), jnp.float32),
                            pltpu.VMEM((tb, D), jnp.float32)],
        ),
        compiler_params=pltpu.CompilerParams(
            dimension_semantics=("parallel", "arbitrary"),
            vmem_limit_bytes=_vmem_limit_bytes(),
        ),
    )(e1, e2, lens)


# ------------------------------ dispatcher -------------------------------


def avg_sim(table, ids1, ids2, lens1, lens2, *, embed_dtype=jnp.float32,
            force_stream=False, batch_tile=None, seq_tile=None):
    """Word-averaging cosine similarity.

    table: (V, D) f32 embedding table (row PAD_IDX assumed ~zero, as in
           nn.Embedding(padding_idx=...)); ids*: (S*, B) int token ids
           (pad = PAD_IDX); lens*: (B,) true sentence lengths.
    returns: (B,) f32 scores = sim_scale * cosine(avg1, avg2)
    """
    V, D = table.shape
    S1, B = ids1.shape
    S2, B2 = ids2.shape
    assert B2 == B

    # Fused-gather eligibility: the (V,1,D) table (sublane-padded, double
    # buffered) must fit a small VMEM budget and the id arrays a small SMEM one.
    tbl_vmem = V * 8 * _round_up(D, 128) * 4 * 2
    ids_smem = 2 * _round_up(max(S1, S2), 8) * _round_up(_round_up(B, 8), 128) * 4
    if (not force_stream) and tbl_vmem <= 8 * 1024 * 1024 and ids_smem <= 256 * 1024:
        return _avg_sim_fused(table, ids1, ids2, lens1, lens2,
                              batch_tile=batch_tile)

    # Streaming fallback: pad the *ids* first so the XLA gather output is born
    # tile-aligned and in the streaming dtype (no extra pad/astype HBM passes).
    itemsize = jnp.dtype(embed_dtype).itemsize
    sub = _SUBLANE.get(itemsize, 8)
    tb = _round_up(batch_tile, sub) if batch_tile else _pick_batch_tile(B, sub)
    b_pad = _round_up(B, tb)
    ts = _round_up(seq_tile, 8) if seq_tile else _pick_seq_tile(max(S1, S2), tb,
                                                                D, itemsize)
    s_pad = _round_up(max(S1, S2), ts)

    def prep_ids(ids, S):
        return jnp.pad(ids.astype(jnp.int32), ((0, s_pad - S), (0, b_pad - B)),
                       constant_values=PAD_IDX)

    tbl = table.astype(embed_dtype)
    e1 = jnp.take(tbl, prep_ids(ids1, S1), axis=0)     # (s_pad, b_pad, D)
    e2 = jnp.take(tbl, prep_ids(ids2, S2), axis=0)
    lens = jnp.stack([lens1, lens2], axis=1).astype(jnp.float32)
    lens = jnp.pad(lens, ((0, b_pad - B), (0, 0)), constant_values=1.0)

    out = _avg_sim_stream_call(e1, e2, lens, tb, ts)
    return out[:B, 0]


# ----------------------------- glue / setup -----------------------------


def make_embedding_table(key, vocab_size, embed_size):
    tbl = jax.random.normal(key, (vocab_size, embed_size), dtype=jnp.float32)
    # nn.Embedding(padding_idx=pad) zeroes the pad row
    return tbl.at[PAD_IDX].set(0.0)


def pad_sentences(sent_ids_list, max_len):
    """list of token-id lists -> (max_len, batch) int32 tensor, pad=PAD_IDX."""
    batch = len(sent_ids_list)
    arr = [[PAD_IDX] * max_len for _ in range(batch)]
    for b, sent in enumerate(sent_ids_list):
        for i, tok in enumerate(sent):
            arr[b][i] = tok
    return jnp.asarray(arr, dtype=jnp.int32).T


def reference_avg_sim(table, ids1, ids2, lens1, lens2):
    e1 = jnp.take(table, ids1, axis=0)
    e2 = jnp.take(table, ids2, axis=0)
    a1 = jnp.sum(e1, axis=0) / lens1[:, None]
    a2 = jnp.sum(e2, axis=0) / lens2[:, None]
    dot = jnp.sum(a1 * a2, axis=-1)
    denom = jnp.maximum(
        jnp.linalg.norm(a1, axis=-1) * jnp.linalg.norm(a2, axis=-1), COS_EPS)
    return dot / denom * SIM_SCALE


if __name__ == "__main__":
    key = jax.random.PRNGKey(0)
    k_emb, k_s1, k_s2 = jax.random.split(key, 3)

    vocab_size = 100
    embed_size = 128
    batch = 16
    max_seq1 = 24
    max_seq2 = 20

    emb_table = make_embedding_table(k_emb, vocab_size, embed_size)

    lens1_int = [((3 * b) % max_seq1) + 1 for b in range(batch)]
    lens2_int = [((5 * b + 2) % (max_seq2 - 1)) + 1 for b in range(batch)]
    ids1_rand = jax.random.randint(k_s1, (batch, max_seq1), 1, vocab_size)
    ids2_rand = jax.random.randint(k_s2, (batch, max_seq2), 1, vocab_size)
    sents1 = [list(map(int, ids1_rand[b, :lens1_int[b]])) for b in range(batch)]
    sents2 = [list(map(int, ids2_rand[b, :lens2_int[b]])) for b in range(batch)]

    ids1 = pad_sentences(sents1, max_seq1)        # (S1, B)
    ids2 = pad_sentences(sents2, max_seq2)        # (S2, B)
    lens1 = jnp.asarray(lens1_int, dtype=jnp.float32)
    lens2 = jnp.asarray(lens2_int, dtype=jnp.float32)

    ref = reference_avg_sim(emb_table, ids1, ids2, lens1, lens2)

    # 1) fused gather-in-kernel path (table fits in VMEM for this vocab)
    s_fused = jax.block_until_ready(avg_sim(emb_table, ids1, ids2, lens1, lens2))
    assert s_fused.shape == (batch,)
    assert jnp.allclose(s_fused, ref, atol=1e-4, rtol=1e-4), (
        float(jnp.max(jnp.abs(s_fused - ref))))

    # 2) streaming fallback (large-vocab path), f32 embedding streams
    s_stream = jax.block_until_ready(
        avg_sim(emb_table, ids1, ids2, lens1, lens2, force_stream=True))
    assert s_stream.shape == (batch,)
    assert jnp.allclose(s_stream, ref, atol=1e-4, rtol=1e-4), (
        float(jnp.max(jnp.abs(s_stream - ref))))

    # 3) streaming fallback with bf16 embedding streams (halved HBM traffic);
    #    compare against the bf16-quantized-table reference (kernel accumulates
    #    in f32, so only input quantization differs).
    s_bf16 = jax.block_until_ready(
        avg_sim(emb_table, ids1, ids2, lens1, lens2, force_stream=True,
                embed_dtype=jnp.bfloat16))
    ref_bf16 = reference_avg_sim(
        emb_table.astype(jnp.bfloat16).astype(jnp.float32),
        ids1, ids2, lens1, lens2)
    assert s_bf16.shape == (batch,)
    assert jnp.allclose(s_bf16, ref_bf16, atol=1e-3, rtol=1e-3), (
        float(jnp.max(jnp.abs(s_bf16 - ref_bf16))))

    print("KERNEL_OK")
</pallas_src>

<mosaic_0001>
module attributes {stable_mosaic.version = 11 : i64} {
  func.func @_avgsim_fused_kernel(%arg0: i32, %arg1: memref<24x16xi32, #tpu.memory_space<smem>>, %arg2: memref<20x16xi32, #tpu.memory_space<smem>>, %arg3: memref<16x2xi32, #tpu.memory_space<smem>>, %arg4: memref<100x1x128xf32, #tpu.memory_space<vmem>>, %arg5: memref<8x128xf32, #tpu.memory_space<vmem>>, %arg6: memref<8x128xf32, #tpu.memory_space<vmem>>, %arg7: memref<8x128xf32, #tpu.memory_space<vmem>>) attributes {dimension_semantics = [#tpu.dimension_semantics<parallel>], iteration_bounds = array<i64: 2>, scalar_prefetch = 3 : i64, scratch_operands = 2 : i64, tpu.core_type = #tpu.core_type<tc>, window_params = [{pipeline_mode = #tpu.pipeline_mode<synchronous>, transform_indices = @transform_0, window_bounds = array<i64: 100, 1, 128>}, {transform_indices = @transform_1, window_bounds = array<i64: 8, 128>}]} {
    %c8_i32 = arith.constant 8 : i32
    %0 = arith.muli %arg0, %c8_i32 : i32
    %c0_i32 = arith.constant 0 : i32
    %1 = arith.addi %0, %c0_i32 : i32
    %2 = arith.index_cast %1 : i32 to index
    %c0 = arith.constant 0 : index
    %3 = memref.load %arg3[%2, %c0] : memref<16x2xi32, #tpu.memory_space<smem>>
    %cst = arith.constant 0.000000e+00 : f32
    %4 = vector.broadcast %cst : f32 to vector<1x128xf32>
    %c0_i32_0 = arith.constant 0 : i32
    %c24_i32 = arith.constant 24 : i32
    %5 = arith.addi %c0_i32_0, %c24_i32 : i32
    %c1_i32 = arith.constant 1 : i32
    %6 = scf.for %arg8 = %c0_i32_0 to %5 step %c1_i32 iter_args(%arg9 = %4) -> (vector<1x128xf32>)  : i32 {
      %182 = arith.index_cast %arg8 : i32 to index
      %183 = arith.index_cast %1 : i32 to index
      %184 = memref.load %arg1[%182, %183] : memref<24x16xi32, #tpu.memory_space<smem>>
      %185 = arith.index_cast %184 : i32 to index
      %c0_135 = arith.constant 0 : index
      %c0_136 = arith.constant 0 : index
      %186 = vector.load %arg4[%185, %c0_135, %c0_136] : memref<100x1x128xf32, #tpu.memory_space<vmem>>, vector<1x1x128xf32>
      %187 = vector.shape_cast %186 : vector<1x1x128xf32> to vector<1x128xf32>
      %188 = arith.cmpi slt, %arg8, %3 : i32
      %cst_137 = arith.constant 0.000000e+00 : f32
      %189 = vector.broadcast %cst_137 : f32 to vector<1x128xf32>
      %190 = arith.select %188, %187, %189 : vector<1x128xf32>
      %191 = arith.addf %arg9, %190 : vector<1x128xf32>
      scf.yield %191 : vector<1x128xf32>
    }
    %c24_i32_1 = arith.constant 24 : i32
    %7 = arith.sitofp %3 : i32 to f32
    %8 = vector.broadcast %7 : f32 to vector<1x128xf32>
    %9 = arith.divf %6, %8 : vector<1x128xf32>
    %c0_2 = arith.constant 0 : index
    %c0_3 = arith.constant 0 : index
    %10 = vector.load %arg6[%c0_2, %c0_3] : memref<8x128xf32, #tpu.memory_space<vmem>>, vector<1x128xf32>
    tpu.vector_store %arg6[%c0_2, %c0_3], %9 {strides = array<i32>} : memref<8x128xf32, #tpu.memory_space<vmem>>, vector<1x128xf32>,
    %11 = arith.index_cast %1 : i32 to index
    %c1 = arith.constant 1 : index
    %12 = memref.load %arg3[%11, %c1] : memref<16x2xi32, #tpu.memory_space<smem>>
    %cst_4 = arith.constant 0.000000e+00 : f32
    %13 = vector.broadcast %cst_4 : f32 to vector<1x128xf32>
    %c0_i32_5 = arith.constant 0 : i32
    %c20_i32 = arith.constant 20 : i32
    %14 = arith.addi %c0_i32_5, %c20_i32 : i32
    %c1_i32_6 = arith.constant 1 : i32
    %15 = scf.for %arg8 = %c0_i32_5 to %14 step %c1_i32_6 iter_args(%arg9 = %13) -> (vector<1x128xf32>)  : i32 {
      %182 = arith.index_cast %arg8 : i32 to index
      %183 = arith.index_cast %1 : i32 to index
      %184 = memref.load %arg2[%182, %183] : memref<20x16xi32, #tpu.memory_space<smem>>
      %185 = arith.index_cast %184 : i32 to index
      %c0_135 = arith.constant 0 : index
      %c0_136 = arith.constant 0 : index
      %186 = vector.load %arg4[%185, %c0_135, %c0_136] : memref<100x1x128xf32, #tpu.memory_space<vmem>>, vector<1x1x128xf32>
      %187 = vector.shape_cast %186 : vector<1x1x128xf32> to vector<1x128xf32>
      %188 = arith.cmpi slt, %arg8, %12 : i32
      %cst_137 = arith.constant 0.000000e+00 : f32
      %189 = vector.broadcast %cst_137 : f32 to vector<1x128xf32>
      %190 = arith.select %188, %187, %189 : vector<1x128xf32>
      %191 = arith.addf %arg9, %190 : vector<1x128xf32>
      scf.yield %191 : vector<1x128xf32>
    }
    %c20_i32_7 = arith.constant 20 : i32
    %16 = arith.sitofp %12 : i32 to f32
    %17 = vector.broadcast %16 : f32 to vector<1x128xf32>
    %18 = arith.divf %15, %17 : vector<1x128xf32>
    %c0_8 = arith.constant 0 : index
    %c0_9 = arith.constant 0 : index
    %19 = vector.load %arg7[%c0_8, %c0_9] : memref<8x128xf32, #tpu.memory_space<vmem>>, vector<1x128xf32>
    tpu.vector_store %arg7[%c0_8, %c0_9], %18 {strides = array<i32>} : memref<8x128xf32, #tpu.memory_space<vmem>>, vector<1x128xf32>,
    %c8_i32_10 = arith.constant 8 : i32
    %20 = arith.muli %arg0, %c8_i32_10 : i32
    %c1_i32_11 = arith.constant 1 : i32
    %21 = arith.addi %20, %c1_i32_11 : i32
    %22 = arith.index_cast %21 : i32 to index
    %c0_12 = arith.constant 0 : index
    %23 = memref.load %arg3[%22, %c0_12] : memref<16x2xi32, #tpu.memory_space<smem>>
    %cst_13 = arith.constant 0.000000e+00 : f32
    %24 = vector.broadcast %cst_13 : f32 to vector<1x128xf32>
    %c0_i32_14 = arith.constant 0 : i32
    %c24_i32_15 = arith.constant 24 : i32
    %25 = arith.addi %c0_i32_14, %c24_i32_15 : i32
    %c1_i32_16 = arith.constant 1 : i32
    %26 = scf.for %arg8 = %c0_i32_14 to %25 step %c1_i32_16 iter_args(%arg9 = %24) -> (vector<1x128xf32>)  : i32 {
      %182 = arith.index_cast %arg8 : i32 to index
      %183 = arith.index_cast %21 : i32 to index
      %184 = memref.load %arg1[%182, %183] : memref<24x16xi32, #tpu.memory_space<smem>>
      %185 = arith.index_cast %184 : i32 to index
      %c0_135 = arith.constant 0 : index
      %c0_136 = arith.constant 0 : index
      %186 = vector.load %arg4[%185, %c0_135, %c0_136] : memref<100x1x128xf32, #tpu.memory_space<vmem>>, vector<1x1x128xf32>
      %187 = vector.shape_cast %186 : vector<1x1x128xf32> to vector<1x128xf32>
      %188 = arith.cmpi slt, %arg8, %23 : i32
      %cst_137 = arith.constant 0.000000e+00 : f32
      %189 = vector.broadcast %cst_137 : f32 to vector<1x128xf32>
      %190 = arith.select %188, %187, %189 : vector<1x128xf32>
      %191 = arith.addf %arg9, %190 : vector<1x128xf32>
      scf.yield %191 : vector<1x128xf32>
    }
    %c24_i32_17 = arith.constant 24 : i32
    %27 = arith.sitofp %23 : i32 to f32
    %28 = vector.broadcast %27 : f32 to vector<1x128xf32>
    %29 = arith.divf %26, %28 : vector<1x128xf32>
    %c1_18 = arith.constant 1 : index
    %c0_19 = arith.constant 0 : index
    %30 = vector.load %arg6[%c1_18, %c0_19] : memref<8x128xf32, #tpu.memory_space<vmem>>, vector<1x128xf32>
    tpu.vector_store %arg6[%c1_18, %c0_19], %29 {strides = array<i32>} : memref<8x128xf32, #tpu.memory_space<vmem>>, vector<1x128xf32>,
    %31 = arith.index_cast %21 : i32 to index
    %c1_20 = arith.constant 1 : index
    %32 = memref.load %arg3[%31, %c1_20] : memref<16x2xi32, #tpu.memory_space<smem>>
    %cst_21 = arith.constant 0.000000e+00 : f32
    %33 = vector.broadcast %cst_21 : f32 to vector<1x128xf32>
    %c0_i32_22 = arith.constant 0 : i32
    %c20_i32_23 = arith.constant 20 : i32
    %34 = arith.addi %c0_i32_22, %c20_i32_23 : i32
    %c1_i32_24 = arith.constant 1 : i32
    %35 = scf.for %arg8 = %c0_i32_22 to %34 step %c1_i32_24 iter_args(%arg9 = %33) -> (vector<1x128xf32>)  : i32 {
      %182 = arith.index_cast %arg8 : i32 to index
      %183 = arith.index_cast %21 : i32 to index
      %184 = memref.load %arg2[%182, %183] : memref<20x16xi32, #tpu.memory_space<smem>>
      %185 = arith.index_cast %184 : i32 to index
      %c0_135 = arith.constant 0 : index
      %c0_136 = arith.constant 0 : index
      %186 = vector.load %arg4[%185, %c0_135, %c0_136] : memref<100x1x128xf32, #tpu.memory_space<vmem>>, vector<1x1x128xf32>
      %187 = vector.shape_cast %186 : vector<1x1x128xf32> to vector<1x128xf32>
      %188 = arith.cmpi slt, %arg8, %32 : i32
      %cst_137 = arith.constant 0.000000e+00 : f32
      %189 = vector.broadcast %cst_137 : f32 to vector<1x128xf32>
      %190 = arith.select %188, %187, %189 : vector<1x128xf32>
      %191 = arith.addf %arg9, %190 : vector<1x128xf32>
      scf.yield %191 : vector<1x128xf32>
    }
    %c20_i32_25 = arith.constant 20 : i32
    %36 = arith.sitofp %32 : i32 to f32
    %37 = vector.broadcast %36 : f32 to vector<1x128xf32>
    %38 = arith.divf %35, %37 : vector<1x128xf32>
    %c1_26 = arith.constant 1 : index
    %c0_27 = arith.constant 0 : index
    %39 = vector.load %arg7[%c1_26, %c0_27] : memref<8x128xf32, #tpu.memory_space<vmem>>, vector<1x128xf32>
    tpu.vector_store %arg7[%c1_26, %c0_27], %38 {strides = array<i32>} : memref<8x128xf32, #tpu.memory_space<vmem>>, vector<1x128xf32>,
    %c8_i32_28 = arith.constant 8 : i32
    %40 = arith.muli %arg0, %c8_i32_28 : i32
    %c2_i32 = arith.constant 2 : i32
    %41 = arith.addi %40, %c2_i32 : i32
    %42 = arith.index_cast %41 : i32 to index
    %c0_29 = arith.constant 0 : index
    %43 = memref.load %arg3[%42, %c0_29] : memref<16x2xi32, #tpu.memory_space<smem>>
    %cst_30 = arith.constant 0.000000e+00 : f32
    %44 = vector.broadcast %cst_30 : f32 to vector<1x128xf32>
    %c0_i32_31 = arith.constant 0 : i32
    %c24_i32_32 = arith.constant 24 : i32
    %45 = arith.addi %c0_i32_31, %c24_i32_32 : i32
    %c1_i32_33 = arith.constant 1 : i32
    %46 = scf.for %arg8 = %c0_i32_31 to %45 step %c1_i32_33 iter_args(%arg9 = %44) -> (vector<1x128xf32>)  : i32 {
      %182 = arith.index_cast %arg8 : i32 to index
      %183 = arith.index_cast %41 : i32 to index
      %184 = memref.load %arg1[%182, %183] : memref<24x16xi32, #tpu.memory_space<smem>>
      %185 = arith.index_cast %184 : i32 to index
      %c0_135 = arith.constant 0 : index
      %c0_136 = arith.constant 0 : index
      %186 = vector.load %arg4[%185, %c0_135, %c0_136] : memref<100x1x128xf32, #tpu.memory_space<vmem>>, vector<1x1x128xf32>
      %187 = vector.shape_cast %186 : vector<1x1x128xf32> to vector<1x128xf32>
      %188 = arith.cmpi slt, %arg8, %43 : i32
      %cst_137 = arith.constant 0.000000e+00 : f32
      %189 = vector.broadcast %cst_137 : f32 to vector<1x128xf32>
      %190 = arith.select %188, %187, %189 : vector<1x128xf32>
      %191 = arith.addf %arg9, %190 : vector<1x128xf32>
      scf.yield %191 : vector<1x128xf32>
    }
    %c24_i32_34 = arith.constant 24 : i32
    %47 = arith.sitofp %43 : i32 to f32
    %48 = vector.broadcast %47 : f32 to vector<1x128xf32>
    %49 = arith.divf %46, %48 : vector<1x128xf32>
    %c2 = arith.constant 2 : index
    %c0_35 = arith.constant 0 : index
    %50 = vector.load %arg6[%c2, %c0_35] : memref<8x128xf32, #tpu.memory_space<vmem>>, vector<1x128xf32>
    tpu.vector_store %arg6[%c2, %c0_35], %49 {strides = array<i32>} : memref<8x128xf32, #tpu.memory_space<vmem>>, vector<1x128xf32>,
    %51 = arith.index_cast %41 : i32 to index
    %c1_36 = arith.constant 1 : index
    %52 = memref.load %arg3[%51, %c1_36] : memref<16x2xi32, #tpu.memory_space<smem>>
    %cst_37 = arith.constant 0.000000e+00 : f32
    %53 = vector.broadcast %cst_37 : f32 to vector<1x128xf32>
    %c0_i32_38 = arith.constant 0 : i32
    %c20_i32_39 = arith.constant 20 : i32
    %54 = arith.addi %c0_i32_38, %c20_i32_39 : i32
    %c1_i32_40 = arith.constant 1 : i32
    %55 = scf.for %arg8 = %c0_i32_38 to %54 step %c1_i32_40 iter_args(%arg9 = %53) -> (vector<1x128xf32>)  : i32 {
      %182 = arith.index_cast %arg8 : i32 to index
      %183 = arith.index_cast %41 : i32 to index
      %184 = memref.load %arg2[%182, %183] : memref<20x16xi32, #tpu.memory_space<smem>>
      %185 = arith.index_cast %184 : i32 to index
      %c0_135 = arith.constant 0 : index
      %c0_136 = arith.constant 0 : index
      %186 = vector.load %arg4[%185, %c0_135, %c0_136] : memref<100x1x128xf32, #tpu.memory_space<vmem>>, vector<1x1x128xf32>
      %187 = vector.shape_cast %186 : vector<1x1x128xf32> to vector<1x128xf32>
      %188 = arith.cmpi slt, %arg8, %52 : i32
      %cst_137 = arith.constant 0.000000e+00 : f32
      %189 = vector.broadcast %cst_137 : f32 to vector<1x128xf32>
      %190 = arith.select %188, %187, %189 : vector<1x128xf32>
      %191 = arith.addf %arg9, %190 : vector<1x128xf32>
      scf.yield %191 : vector<1x128xf32>
    }
    %c20_i32_41 = arith.constant 20 : i32
    %56 = arith.sitofp %52 : i32 to f32
    %57 = vector.broadcast %56 : f32 to vector<1x128xf32>
    %58 = arith.divf %55, %57 : vector<1x128xf32>
    %c2_42 = arith.constant 2 : index
    %c0_43 = arith.constant 0 : index
    %59 = vector.load %arg7[%c2_42, %c0_43] : memref<8x128xf32, #tpu.memory_space<vmem>>, vector<1x128xf32>
    tpu.vector_store %arg7[%c2_42, %c0_43], %58 {strides = array<i32>} : memref<8x128xf32, #tpu.memory_space<vmem>>, vector<1x128xf32>,
    %c8_i32_44 = arith.constant 8 : i32
    %60 = arith.muli %arg0, %c8_i32_44 : i32
    %c3_i32 = arith.constant 3 : i32
    %61 = arith.addi %60, %c3_i32 : i32
    %62 = arith.index_cast %61 : i32 to index
    %c0_45 = arith.constant 0 : index
    %63 = memref.load %arg3[%62, %c0_45] : memref<16x2xi32, #tpu.memory_space<smem>>
    %cst_46 = arith.constant 0.000000e+00 : f32
    %64 = vector.broadcast %cst_46 : f32 to vector<1x128xf32>
    %c0_i32_47 = arith.constant 0 : i32
    %c24_i32_48 = arith.constant 24 : i32
    %65 = arith.addi %c0_i32_47, %c24_i32_48 : i32
    %c1_i32_49 = arith.constant 1 : i32
    %66 = scf.for %arg8 = %c0_i32_47 to %65 step %c1_i32_49 iter_args(%arg9 = %64) -> (vector<1x128xf32>)  : i32 {
      %182 = arith.index_cast %arg8 : i32 to index
      %183 = arith.index_cast %61 : i32 to index
      %184 = memref.load %arg1[%182, %183] : memref<24x16xi32, #tpu.memory_space<smem>>
      %185 = arith.index_cast %184 : i32 to index
      %c0_135 = arith.constant 0 : index
      %c0_136 = arith.constant 0 : index
      %186 = vector.load %arg4[%185, %c0_135, %c0_136] : memref<100x1x128xf32, #tpu.memory_space<vmem>>, vector<1x1x128xf32>
      %187 = vector.shape_cast %186 : vector<1x1x128xf32> to vector<1x128xf32>
      %188 = arith.cmpi slt, %arg8, %63 : i32
      %cst_137 = arith.constant 0.000000e+00 : f32
      %189 = vector.broadcast %cst_137 : f32 to vector<1x128xf32>
      %190 = arith.select %188, %187, %189 : vector<1x128xf32>
      %191 = arith.addf %arg9, %190 : vector<1x128xf32>
      scf.yield %191 : vector<1x128xf32>
    }
    %c24_i32_50 = arith.constant 24 : i32
    %67 = arith.sitofp %63 : i32 to f32
    %68 = vector.broadcast %67 : f32 to vector<1x128xf32>
    %69 = arith.divf %66, %68 : vector<1x128xf32>
    %c3 = arith.constant 3 : index
    %c0_51 = arith.constant 0 : index
    %70 = vector.load %arg6[%c3, %c0_51] : memref<8x128xf32, #tpu.memory_space<vmem>>, vector<1x128xf32>
    tpu.vector_store %arg6[%c3, %c0_51], %69 {strides = array<i32>} : memref<8x128xf32, #tpu.memory_space<vmem>>, vector<1x128xf32>,
    %71 = arith.index_cast %61 : i32 to index
    %c1_52 = arith.constant 1 : index
    %72 = memref.load %arg3[%71, %c1_52] : memref<16x2xi32, #tpu.memory_space<smem>>
    %cst_53 = arith.constant 0.000000e+00 : f32
    %73 = vector.broadcast %cst_53 : f32 to vector<1x128xf32>
    %c0_i32_54 = arith.constant 0 : i32
    %c20_i32_55 = arith.constant 20 : i32
    %74 = arith.addi %c0_i32_54, %c20_i32_55 : i32
    %c1_i32_56 = arith.constant 1 : i32
    %75 = scf.for %arg8 = %c0_i32_54 to %74 step %c1_i32_56 iter_args(%arg9 = %73) -> (vector<1x128xf32>)  : i32 {
      %182 = arith.index_cast %arg8 : i32 to index
      %183 = arith.index_cast %61 : i32 to index
      %184 = memref.load %arg2[%182, %183] : memref<20x16xi32, #tpu.memory_space<smem>>
      %185 = arith.index_cast %184 : i32 to index
      %c0_135 = arith.constant 0 : index
      %c0_136 = arith.constant 0 : index
      %186 = vector.load %arg4[%185, %c0_135, %c0_136] : memref<100x1x128xf32, #tpu.memory_space<vmem>>, vector<1x1x128xf32>
      %187 = vector.shape_cast %186 : vector<1x1x128xf32> to vector<1x128xf32>
      %188 = arith.cmpi slt, %arg8, %72 : i32
      %cst_137 = arith.constant 0.000000e+00 : f32
      %189 = vector.broadcast %cst_137 : f32 to vector<1x128xf32>
      %190 = arith.select %188, %187, %189 : vector<1x128xf32>
      %191 = arith.addf %arg9, %190 : vector<1x128xf32>
      scf.yield %191 : vector<1x128xf32>
    }
    %c20_i32_57 = arith.constant 20 : i32
    %76 = arith.sitofp %72 : i32 to f32
    %77 = vector.broadcast %76 : f32 to vector<1x128xf32>
    %78 = arith.divf %75, %77 : vector<1x128xf32>
    %c3_58 = arith.constant 3 : index
    %c0_59 = arith.constant 0 : index
    %79 = vector.load %arg7[%c3_58, %c0_59] : memref<8x128xf32, #tpu.memory_space<vmem>>, vector<1x128xf32>
    tpu.vector_store %arg7[%c3_58, %c0_59], %78 {strides = array<i32>} : memref<8x128xf32, #tpu.memory_space<vmem>>, vector<1x128xf32>,
    %c8_i32_60 = arith.constant 8 : i32
    %80 = arith.muli %arg0, %c8_i32_60 : i32
    %c4_i32 = arith.constant 4 : i32
    %81 = arith.addi %80, %c4_i32 : i32
    %82 = arith.index_cast %81 : i32 to index
    %c0_61 = arith.constant 0 : index
    %83 = memref.load %arg3[%82, %c0_61] : memref<16x2xi32, #tpu.memory_space<smem>>
    %cst_62 = arith.constant 0.000000e+00 : f32
    %84 = vector.broadcast %cst_62 : f32 to vector<1x128xf32>
    %c0_i32_63 = arith.constant 0 : i32
    %c24_i32_64 = arith.constant 24 : i32
    %85 = arith.addi %c0_i32_63, %c24_i32_64 : i32
    %c1_i32_65 = arith.constant 1 : i32
    %86 = scf.for %arg8 = %c0_i32_63 to %85 step %c1_i32_65 iter_args(%arg9 = %84) -> (vector<1x128xf32>)  : i32 {
      %182 = arith.index_cast %arg8 : i32 to index
      %183 = arith.index_cast %81 : i32 to index
      %184 = memref.load %arg1[%182, %183] : memref<24x16xi32, #tpu.memory_space<smem>>
      %185 = arith.index_cast %184 : i32 to index
      %c0_135 = arith.constant 0 : index
      %c0_136 = arith.constant 0 : index
      %186 = vector.load %arg4[%185, %c0_135, %c0_136] : memref<100x1x128xf32, #tpu.memory_space<vmem>>, vector<1x1x128xf32>
      %187 = vector.shape_cast %186 : vector<1x1x128xf32> to vector<1x128xf32>
      %188 = arith.cmpi slt, %arg8, %83 : i32
      %cst_137 = arith.constant 0.000000e+00 : f32
      %189 = vector.broadcast %cst_137 : f32 to vector<1x128xf32>
      %190 = arith.select %188, %187, %189 : vector<1x128xf32>
      %191 = arith.addf %arg9, %190 : vector<1x128xf32>
      scf.yield %191 : vector<1x128xf32>
    }
    %c24_i32_66 = arith.constant 24 : i32
    %87 = arith.sitofp %83 : i32 to f32
    %88 = vector.broadcast %87 : f32 to vector<1x128xf32>
    %89 = arith.divf %86, %88 : vector<1x128xf32>
    %c4 = arith.constant 4 : index
    %c0_67 = arith.constant 0 : index
    %90 = vector.load %arg6[%c4, %c0_67] : memref<8x128xf32, #tpu.memory_space<vmem>>, vector<1x128xf32>
    tpu.vector_store %arg6[%c4, %c0_67], %89 {strides = array<i32>} : memref<8x128xf32, #tpu.memory_space<vmem>>, vector<1x128xf32>,
    %91 = arith.index_cast %81 : i32 to index
    %c1_68 = arith.constant 1 : index
    %92 = memref.load %arg3[%91, %c1_68] : memref<16x2xi32, #tpu.memory_space<smem>>
    %cst_69 = arith.constant 0.000000e+00 : f32
    %93 = vector.broadcast %cst_69 : f32 to vector<1x128xf32>
    %c0_i32_70 = arith.constant 0 : i32
    %c20_i32_71 = arith.constant 20 : i32
    %94 = arith.addi %c0_i32_70, %c20_i32_71 : i32
    %c1_i32_72 = arith.constant 1 : i32
    %95 = scf.for %arg8 = %c0_i32_70 to %94 step %c1_i32_72 iter_args(%arg9 = %93) -> (vector<1x128xf32>)  : i32 {
      %182 = arith.index_cast %arg8 : i32 to index
      %183 = arith.index_cast %81 : i32 to index
      %184 = memref.load %arg2[%182, %183] : memref<20x16xi32, #tpu.memory_space<smem>>
      %185 = arith.index_cast %184 : i32 to index
      %c0_135 = arith.constant 0 : index
      %c0_136 = arith.constant 0 : index
      %186 = vector.load %arg4[%185, %c0_135, %c0_136] : memref<100x1x128xf32, #tpu.memory_space<vmem>>, vector<1x1x128xf32>
      %187 = vector.shape_cast %186 : vector<1x1x128xf32> to vector<1x128xf32>
      %188 = arith.cmpi slt, %arg8, %92 : i32
      %cst_137 = arith.constant 0.000000e+00 : f32
      %189 = vector.broadcast %cst_137 : f32 to vector<1x128xf32>
      %190 = arith.select %188, %187, %189 : vector<1x128xf32>
      %191 = arith.addf %arg9, %190 : vector<1x128xf32>
      scf.yield %191 : vector<1x128xf32>
    }
    %c20_i32_73 = arith.constant 20 : i32
    %96 = arith.sitofp %92 : i32 to f32
    %97 = vector.broadcast %96 : f32 to vector<1x128xf32>
    %98 = arith.divf %95, %97 : vector<1x128xf32>
    %c4_74 = arith.constant 4 : index
    %c0_75 = arith.constant 0 : index
    %99 = vector.load %arg7[%c4_74, %c0_75] : memref<8x128xf32, #tpu.memory_space<vmem>>, vector<1x128xf32>
    tpu.vector_store %arg7[%c4_74, %c0_75], %98 {strides = array<i32>} : memref<8x128xf32, #tpu.memory_space<vmem>>, vector<1x128xf32>,
    %c8_i32_76 = arith.constant 8 : i32
    %100 = arith.muli %arg0, %c8_i32_76 : i32
    %c5_i32 = arith.constant 5 : i32
    %101 = arith.addi %100, %c5_i32 : i32
    %102 = arith.index_cast %101 : i32 to index
    %c0_77 = arith.constant 0 : index
    %103 = memref.load %arg3[%102, %c0_77] : memref<16x2xi32, #tpu.memory_space<smem>>
    %cst_78 = arith.constant 0.000000e+00 : f32
    %104 = vector.broadcast %cst_78 : f32 to vector<1x128xf32>
    %c0_i32_79 = arith.constant 0 : i32
    %c24_i32_80 = arith.constant 24 : i32
    %105 = arith.addi %c0_i32_79, %c24_i32_80 : i32
    %c1_i32_81 = arith.constant 1 : i32
    %106 = scf.for %arg8 = %c0_i32_79 to %105 step %c1_i32_81 iter_args(%arg9 = %104) -> (vector<1x128xf32>)  : i32 {
      %182 = arith.index_cast %arg8 : i32 to index
      %183 = arith.index_cast %101 : i32 to index
      %184 = memref.load %arg1[%182, %183] : memref<24x16xi32, #tpu.memory_space<smem>>
      %185 = arith.index_cast %184 : i32 to index
      %c0_135 = arith.constant 0 : index
      %c0_136 = arith.constant 0 : index
      %186 = vector.load %arg4[%185, %c0_135, %c0_136] : memref<100x1x128xf32, #tpu.memory_space<vmem>>, vector<1x1x128xf32>
      %187 = vector.shape_cast %186 : vector<1x1x128xf32> to vector<1x128xf32>
      %188 = arith.cmpi slt, %arg8, %103 : i32
      %cst_137 = arith.constant 0.000000e+00 : f32
      %189 = vector.broadcast %cst_137 : f32 to vector<1x128xf32>
      %190 = arith.select %188, %187, %189 : vector<1x128xf32>
      %191 = arith.addf %arg9, %190 : vector<1x128xf32>
      scf.yield %191 : vector<1x128xf32>
    }
    %c24_i32_82 = arith.constant 24 : i32
    %107 = arith.sitofp %103 : i32 to f32
    %108 = vector.broadcast %107 : f32 to vector<1x128xf32>
    %109 = arith.divf %106, %108 : vector<1x128xf32>
    %c5 = arith.constant 5 : index
    %c0_83 = arith.constant 0 : index
    %110 = vector.load %arg6[%c5, %c0_83] : memref<8x128xf32, #tpu.memory_space<vmem>>, vector<1x128xf32>
    tpu.vector_store %arg6[%c5, %c0_83], %109 {strides = array<i32>} : memref<8x128xf32, #tpu.memory_space<vmem>>, vector<1x128xf32>,
    %111 = arith.index_cast %101 : i32 to index
    %c1_84 = arith.constant 1 : index
    %112 = memref.load %arg3[%111, %c1_84] : memref<16x2xi32, #tpu.memory_space<smem>>
    %cst_85 = arith.constant 0.000000e+00 : f32
    %113 = vector.broadcast %cst_85 : f32 to vector<1x128xf32>
    %c0_i32_86 = arith.constant 0 : i32
    %c20_i32_87 = arith.constant 20 : i32
    %114 = arith.addi %c0_i32_86, %c20_i32_87 : i32
    %c1_i32_88 = arith.constant 1 : i32
    %115 = scf.for %arg8 = %c0_i32_86 to %114 step %c1_i32_88 iter_args(%arg9 = %113) -> (vector<1x128xf32>)  : i32 {
      %182 = arith.index_cast %arg8 : i32 to index
      %183 = arith.index_cast %101 : i32 to index
      %184 = memref.load %arg2[%182, %183] : memref<20x16xi32, #tpu.memory_space<smem>>
      %185 = arith.index_cast %184 : i32 to index
      %c0_135 = arith.constant 0 : index
      %c0_136 = arith.constant 0 : index
      %186 = vector.load %arg4[%185, %c0_135, %c0_136] : memref<100x1x128xf32, #tpu.memory_space<vmem>>, vector<1x1x128xf32>
      %187 = vector.shape_cast %186 : vector<1x1x128xf32> to vector<1x128xf32>
      %188 = arith.cmpi slt, %arg8, %112 : i32
      %cst_137 = arith.constant 0.000000e+00 : f32
      %189 = vector.broadcast %cst_137 : f32 to vector<1x128xf32>
      %190 = arith.select %188, %187, %189 : vector<1x128xf32>
      %191 = arith.addf %arg9, %190 : vector<1x128xf32>
      scf.yield %191 : vector<1x128xf32>
    }
    %c20_i32_89 = arith.constant 20 : i32
    %116 = arith.sitofp %112 : i32 to f32
    %117 = vector.broadcast %116 : f32 to vector<1x128xf32>
    %118 = arith.divf %115, %117 : vector<1x128xf32>
    %c5_90 = arith.constant 5 : index
    %c0_91 = arith.constant 0 : index
    %119 = vector.load %arg7[%c5_90, %c0_91] : memref<8x128xf32, #tpu.memory_space<vmem>>, vector<1x128xf32>
    tpu.vector_store %arg7[%c5_90, %c0_91], %118 {strides = array<i32>} : memref<8x128xf32, #tpu.memory_space<vmem>>, vector<1x128xf32>,
    %c8_i32_92 = arith.constant 8 : i32
    %120 = arith.muli %arg0, %c8_i32_92 : i32
    %c6_i32 = arith.constant 6 : i32
    %121 = arith.addi %120, %c6_i32 : i32
    %122 = arith.index_cast %121 : i32 to index
    %c0_93 = arith.constant 0 : index
    %123 = memref.load %arg3[%122, %c0_93] : memref<16x2xi32, #tpu.memory_space<smem>>
    %cst_94 = arith.constant 0.000000e+00 : f32
    %124 = vector.broadcast %cst_94 : f32 to vector<1x128xf32>
    %c0_i32_95 = arith.constant 0 : i32
    %c24_i32_96 = arith.constant 24 : i32
    %125 = arith.addi %c0_i32_95, %c24_i32_96 : i32
    %c1_i32_97 = arith.constant 1 : i32
    %126 = scf.for %arg8 = %c0_i32_95 to %125 step %c1_i32_97 iter_args(%arg9 = %124) -> (vector<1x128xf32>)  : i32 {
      %182 = arith.index_cast %arg8 : i32 to index
      %183 = arith.index_cast %121 : i32 to index
      %184 = memref.load %arg1[%182, %183] : memref<24x16xi32, #tpu.memory_space<smem>>
      %185 = arith.index_cast %184 : i32 to index
      %c0_135 = arith.constant 0 : index
      %c0_136 = arith.constant 0 : index
      %186 = vector.load %arg4[%185, %c0_135, %c0_136] : memref<100x1x128xf32, #tpu.memory_space<vmem>>, vector<1x1x128xf32>
      %187 = vector.shape_cast %186 : vector<1x1x128xf32> to vector<1x128xf32>
      %188 = arith.cmpi slt, %arg8, %123 : i32
      %cst_137 = arith.constant 0.000000e+00 : f32
      %189 = vector.broadcast %cst_137 : f32 to vector<1x128xf32>
      %190 = arith.select %188, %187, %189 : vector<1x128xf32>
      %191 = arith.addf %arg9, %190 : vector<1x128xf32>
      scf.yield %191 : vector<1x128xf32>
    }
    %c24_i32_98 = arith.constant 24 : i32
    %127 = arith.sitofp %123 : i32 to f32
    %128 = vector.broadcast %127 : f32 to vector<1x128xf32>
    %129 = arith.divf %126, %128 : vector<1x128xf32>
    %c6 = arith.constant 6 : index
    %c0_99 = arith.constant 0 : index
    %130 = vector.load %arg6[%c6, %c0_99] : memref<8x128xf32, #tpu.memory_space<vmem>>, vector<1x128xf32>
    tpu.vector_store %arg6[%c6, %c0_99], %129 {strides = array<i32>} : memref<8x128xf32, #tpu.memory_space<vmem>>, vector<1x128xf32>,
    %131 = arith.index_cast %121 : i32 to index
    %c1_100 = arith.constant 1 : index
    %132 = memref.load %arg3[%131, %c1_100] : memref<16x2xi32, #tpu.memory_space<smem>>
    %cst_101 = arith.constant 0.000000e+00 : f32
    %133 = vector.broadcast %cst_101 : f32 to vector<1x128xf32>
    %c0_i32_102 = arith.constant 0 : i32
    %c20_i32_103 = arith.constant 20 : i32
    %134 = arith.addi %c0_i32_102, %c20_i32_103 : i32
    %c1_i32_104 = arith.constant 1 : i32
    %135 = scf.for %arg8 = %c0_i32_102 to %134 step %c1_i32_104 iter_args(%arg9 = %133) -> (vector<1x128xf32>)  : i32 {
      %182 = arith.index_cast %arg8 : i32 to index
      %183 = arith.index_cast %121 : i32 to index
      %184 = memref.load %arg2[%182, %183] : memref<20x16xi32, #tpu.memory_space<smem>>
      %185 = arith.index_cast %184 : i32 to index
      %c0_135 = arith.constant 0 : index
      %c0_136 = arith.constant 0 : index
      %186 = vector.load %arg4[%185, %c0_135, %c0_136] : memref<100x1x128xf32, #tpu.memory_space<vmem>>, vector<1x1x128xf32>
      %187 = vector.shape_cast %186 : vector<1x1x128xf32> to vector<1x128xf32>
      %188 = arith.cmpi slt, %arg8, %132 : i32
      %cst_137 = arith.constant 0.000000e+00 : f32
      %189 = vector.broadcast %cst_137 : f32 to vector<1x128xf32>
      %190 = arith.select %188, %187, %189 : vector<1x128xf32>
      %191 = arith.addf %arg9, %190 : vector<1x128xf32>
      scf.yield %191 : vector<1x128xf32>
    }
    %c20_i32_105 = arith.constant 20 : i32
    %136 = arith.sitofp %132 : i32 to f32
    %137 = vector.broadcast %136 : f32 to vector<1x128xf32>
    %138 = arith.divf %135, %137 : vector<1x128xf32>
    %c6_106 = arith.constant 6 : index
    %c0_107 = arith.constant 0 : index
    %139 = vector.load %arg7[%c6_106, %c0_107] : memref<8x128xf32, #tpu.memory_space<vmem>>, vector<1x128xf32>
    tpu.vector_store %arg7[%c6_106, %c0_107], %138 {strides = array<i32>} : memref<8x128xf32, #tpu.memory_space<vmem>>, vector<1x128xf32>,
    %c8_i32_108 = arith.constant 8 : i32
    %140 = arith.muli %arg0, %c8_i32_108 : i32
    %c7_i32 = arith.constant 7 : i32
    %141 = arith.addi %140, %c7_i32 : i32
    %142 = arith.index_cast %141 : i32 to index
    %c0_109 = arith.constant 0 : index
    %143 = memref.load %arg3[%142, %c0_109] : memref<16x2xi32, #tpu.memory_space<smem>>
    %cst_110 = arith.constant 0.000000e+00 : f32
    %144 = vector.broadcast %cst_110 : f32 to vector<1x128xf32>
    %c0_i32_111 = arith.constant 0 : i32
    %c24_i32_112 = arith.constant 24 : i32
    %145 = arith.addi %c0_i32_111, %c24_i32_112 : i32
    %c1_i32_113 = arith.constant 1 : i32
    %146 = scf.for %arg8 = %c0_i32_111 to %145 step %c1_i32_113 iter_args(%arg9 = %144) -> (vector<1x128xf32>)  : i32 {
      %182 = arith.index_cast %arg8 : i32 to index
      %183 = arith.index_cast %141 : i32 to index
      %184 = memref.load %arg1[%182, %183] : memref<24x16xi32, #tpu.memory_space<smem>>
      %185 = arith.index_cast %184 : i32 to index
      %c0_135 = arith.constant 0 : index
      %c0_136 = arith.constant 0 : index
      %186 = vector.load %arg4[%185, %c0_135, %c0_136] : memref<100x1x128xf32, #tpu.memory_space<vmem>>, vector<1x1x128xf32>
      %187 = vector.shape_cast %186 : vector<1x1x128xf32> to vector<1x128xf32>
      %188 = arith.cmpi slt, %arg8, %143 : i32
      %cst_137 = arith.constant 0.000000e+00 : f32
      %189 = vector.broadcast %cst_137 : f32 to vector<1x128xf32>
      %190 = arith.select %188, %187, %189 : vector<1x128xf32>
      %191 = arith.addf %arg9, %190 : vector<1x128xf32>
      scf.yield %191 : vector<1x128xf32>
    }
    %c24_i32_114 = arith.constant 24 : i32
    %147 = arith.sitofp %143 : i32 to f32
    %148 = vector.broadcast %147 : f32 to vector<1x128xf32>
    %149 = arith.divf %146, %148 : vector<1x128xf32>
    %c7 = arith.constant 7 : index
    %c0_115 = arith.constant 0 : index
    %150 = vector.load %arg6[%c7, %c0_115] : memref<8x128xf32, #tpu.memory_space<vmem>>, vector<1x128xf32>
    tpu.vector_store %arg6[%c7, %c0_115], %149 {strides = array<i32>} : memref<8x128xf32, #tpu.memory_space<vmem>>, vector<1x128xf32>,
    %151 = arith.index_cast %141 : i32 to index
    %c1_116 = arith.constant 1 : index
    %152 = memref.load %arg3[%151, %c1_116] : memref<16x2xi32, #tpu.memory_space<smem>>
    %cst_117 = arith.constant 0.000000e+00 : f32
    %153 = vector.broadcast %cst_117 : f32 to vector<1x128xf32>
    %c0_i32_118 = arith.constant 0 : i32
    %c20_i32_119 = arith.constant 20 : i32
    %154 = arith.addi %c0_i32_118, %c20_i32_119 : i32
    %c1_i32_120 = arith.constant 1 : i32
    %155 = scf.for %arg8 = %c0_i32_118 to %154 step %c1_i32_120 iter_args(%arg9 = %153) -> (vector<1x128xf32>)  : i32 {
      %182 = arith.index_cast %arg8 : i32 to index
      %183 = arith.index_cast %141 : i32 to index
      %184 = memref.load %arg2[%182, %183] : memref<20x16xi32, #tpu.memory_space<smem>>
      %185 = arith.index_cast %184 : i32 to index
      %c0_135 = arith.constant 0 : index
      %c0_136 = arith.constant 0 : index
      %186 = vector.load %arg4[%185, %c0_135, %c0_136] : memref<100x1x128xf32, #tpu.memory_space<vmem>>, vector<1x1x128xf32>
      %187 = vector.shape_cast %186 : vector<1x1x128xf32> to vector<1x128xf32>
      %188 = arith.cmpi slt, %arg8, %152 : i32
      %cst_137 = arith.constant 0.000000e+00 : f32
      %189 = vector.broadcast %cst_137 : f32 to vector<1x128xf32>
      %190 = arith.select %188, %187, %189 : vector<1x128xf32>
      %191 = arith.addf %arg9, %190 : vector<1x128xf32>
      scf.yield %191 : vector<1x128xf32>
    }
    %c20_i32_121 = arith.constant 20 : i32
    %156 = arith.sitofp %152 : i32 to f32
    %157 = vector.broadcast %156 : f32 to vector<1x128xf32>
    %158 = arith.divf %155, %157 : vector<1x128xf32>
    %c7_122 = arith.constant 7 : index
    %c0_123 = arith.constant 0 : index
    %159 = vector.load %arg7[%c7_122, %c0_123] : memref<8x128xf32, #tpu.memory_space<vmem>>, vector<1x128xf32>
    tpu.vector_store %arg7[%c7_122, %c0_123], %158 {strides = array<i32>} : memref<8x128xf32, #tpu.memory_space<vmem>>, vector<1x128xf32>,
    %c0_124 = arith.constant 0 : index
    %c0_125 = arith.constant 0 : index
    %160 = vector.load %arg6[%c0_124, %c0_125] : memref<8x128xf32, #tpu.memory_space<vmem>>, vector<8x128xf32>
    %c0_126 = arith.constant 0 : index
    %c0_127 = arith.constant 0 : index
    %161 = vector.load %arg7[%c0_126, %c0_127] : memref<8x128xf32, #tpu.memory_space<vmem>>, vector<8x128xf32>
    %162 = arith.mulf %160, %161 : vector<8x128xf32>
    %cst_128 = arith.constant dense<0.000000e+00> : vector<8xf32>
    %163 = vector.multi_reduction <add>, %162, %cst_128 [1] : vector<8x128xf32> to vector<8xf32>
    %164 = vector.shape_cast %163 : vector<8xf32> to vector<8x1xf32>
    %165 = arith.mulf %160, %160 : vector<8x128xf32>
    %cst_129 = arith.constant dense<0.000000e+00> : vector<8xf32>
    %166 = vector.multi_reduction <add>, %165, %cst_129 [1] : vector<8x128xf32> to vector<8xf32>
    %167 = vector.shape_cast %166 : vector<8xf32> to vector<8x1xf32>
    %168 = math.sqrt %167 : vector<8x1xf32>
    %169 = arith.mulf %161, %161 : vector<8x128xf32>
    %cst_130 = arith.constant dense<0.000000e+00> : vector<8xf32>
    %170 = vector.multi_reduction <add>, %169, %cst_130 [1] : vector<8x128xf32> to vector<8xf32>
    %171 = vector.shape_cast %170 : vector<8xf32> to vector<8x1xf32>
    %172 = math.sqrt %171 : vector<8x1xf32>
    %173 = arith.mulf %168, %172 : vector<8x1xf32>
    %cst_131 = arith.constant 9.99999993E-9 : f32
    %174 = vector.broadcast %cst_131 : f32 to vector<8x1xf32>
    %175 = arith.maximumf %173, %174 : vector<8x1xf32>
    %176 = arith.divf %164, %175 : vector<8x1xf32>
    %cst_132 = arith.constant 5.000000e+00 : f32
    %177 = vector.broadcast %cst_132 : f32 to vector<8x1xf32>
    %178 = arith.mulf %176, %177 : vector<8x1xf32>
    %179 = vector.shape_cast %178 : vector<8x1xf32> to vector<8x1xf32>
    %180 = vector.broadcast %179 : vector<8x1xf32> to vector<8x128xf32>
    %c0_133 = arith.constant 0 : index
    %c0_134 = arith.constant 0 : index
    %181 = vector.load %arg5[%c0_133, %c0_134] : memref<8x128xf32, #tpu.memory_space<vmem>>, vector<8x128xf32>
    tpu.vector_store %arg5[%c0_133, %c0_134], %180 {strides = array<i32>} : memref<8x128xf32, #tpu.memory_space<vmem>>, vector<8x128xf32>,
    return
  }
  func.func @transform_0(%arg0: i32, %arg1: memref<24x16xi32, #tpu.memory_space<smem>>, %arg2: memref<20x16xi32, #tpu.memory_space<smem>>, %arg3: memref<16x2xi32, #tpu.memory_space<smem>>) -> (i32, i32, i32) {
    %c0_i32 = arith.constant 0 : i32
    %c0_i32_0 = arith.constant 0 : i32
    %c0_i32_1 = arith.constant 0 : i32
    %c0_i32_2 = arith.constant 0 : i32
    return %c0_i32, %c0_i32_0, %c0_i32_1 : i32, i32, i32
  }
  func.func @transform_1(%arg0: i32, %arg1: memref<24x16xi32, #tpu.memory_space<smem>>, %arg2: memref<20x16xi32, #tpu.memory_space<smem>>, %arg3: memref<16x2xi32, #tpu.memory_space<smem>>) -> (i32, i32) {
    %c0_i32 = arith.constant 0 : i32
    %c0_i32_0 = arith.constant 0 : i32
    return %arg0, %c0_i32 : i32, i32
  }
}

</mosaic_0001>

<llo_original>
// kernel: tpu_custom_call.1
$region0: #{tpu_custom_call.1}
  #allocation0 [shape = 'u32[]', space=smem, size = 0x4, offset = 0x4, fixed_abs, tag = 'smem constant byte address 0x4 - core index']
  #allocation1 [shape = 'u32[144,128]{1,0:T(1,128)}', space=vmem, size = 0x12000, scoped, tag = 'internal scratch']
  #allocation2 [shape = 'f32[8,128]{1,0:T(8,128)}', space=vmem, size = 0x1000, scoped, tag = 'scratch operand']
  #allocation3 [shape = 'f32[8,128]{1,0:T(8,128)}', space=vmem, size = 0x1000, scoped, tag = 'scratch operand']
  #allocation4 [shape = 's32[1]{0}', space=sflag, size = 0x4, scoped, tag = 'scoped memory for tpu_custom_call.1']
  #allocation5 [shape = 'u8[12288]{0}', space=smem, size = 0x3000, scoped, tag = 'prefetched SMEM operand 0']
  #allocation6 [shape = 'u8[12288]{0}', space=smem, size = 0x3000, scoped, tag = 'prefetched SMEM operand 1']
  #allocation7 [shape = 'u8[8192]{0}', space=smem, size = 0x2000, scoped, tag = 'prefetched SMEM operand 2']
  %s0 = inlined_call_operand.vmem [shape: s32[24,16], index: 0, kind: input, shape index: {}]
  %s1 = inlined_call_operand.vmem [shape: s32[20,16], index: 1, kind: input, shape index: {}]
  %s2 = inlined_call_operand.vmem [shape: s32[16,2], index: 2, kind: input, shape index: {}]
  %s3 = inlined_call_operand.vmem [shape: f32[100,1,128], index: 3, kind: input, shape index: {}]
  %s4 = inlined_call_operand.hbm [shape: f32[16,128], index: 4, kind: output, shape index: {}]
  %s5 = sld [smem:[#allocation0]]
  $region149: #{tpu_custom_call.1} parent=0
    _
  %s7 = ssub.s32 1, %s5
  %s8 = scalar_select 0, %s7, %s5
  %s9 = sshll.u32 %s0, 4
  %s10 = int_to_ptr.vmem [resolvable:$true] %s9
  %12 = dma.vmem_to_smem %s10, 384, [#allocation5], [#allocation4]
  %s13 = sshll.u32 %s1, 4
  %s14 = int_to_ptr.vmem [resolvable:$true] %s13
  %16 = dma.vmem_to_smem %s14, 384, [#allocation6], [#allocation4]
  %s17 = sshll.u32 %s2, 4
  %s18 = int_to_ptr.vmem [resolvable:$true] %s17
  %20 = dma.vmem_to_smem %s18, 256, [#allocation7], [#allocation4]
  %21 = dma.done [#allocation4], 1024
  %22 = sfence
  $region1: #{tpu_custom_call.1} parent=0
    #allocation8 [shape = 'u8[8192]{0}', space=vmem, size = 0x2000, scoped, tag = 'output window, operand 0']
    #allocation9 [shape = 's32[2]{0}', space=sflag, size = 0x8, scoped, tag = 'scoped memory for tpu_custom_call.1']
    %23 = vsyncpa [#allocation9], 0
    %s24 = scalar_lea.sflag [#allocation9], 1
    %25 = vsyncpa %s24, 0
    loop: start=0, step=1, limit=4
    $region2: #{tpu_custom_call.1} parent=1 // loop_pre_header
      _
    $region3: #{tpu_custom_call.1} parent=1 // loop_header
      %s27 = sphi 0, %s31
      %p28 = scmp.ge.s32.totalorder %s27, 4
      %s35 = sphi 0, %s35
      %s37 = sphi 0, %s35
      %s38 = sphi 0, %s37
      %s52 = sphi 0, %s38
      %s58 = sphi 0, %s60
      %s61 = sphi 0, %s58
      %s62 = sphi 0, %s61
      %s78 = sphi 0, %s62
    $region4: #{tpu_custom_call.1} parent=1 // loop_header_branch
      %30 = sbr.rel (%p28) target = $region8
    $region5: #{tpu_custom_call.1} parent=1 // loop_body
      %s32 = ssub.s32 %s27, 1
      %s33 = ssub.s32 %s27, 2
      %s34 = sadd.s32 %s27, 1
      %s36 = sadd.s32 %s35, 1
      %p39 = scmp.eq.s32.totalorder %s27, 1
      %p40 = scmp.ne.s32.totalorder %s35, %s37
      %p41 = scmp.eq.s32.totalorder %s27, 0
      %p42 = por %p40, %p41
      %p43 = scmp.ne.s32.totalorder %s35, %s37
      %p44 = scmp.eq.s32.totalorder %s32, 1
      %p45 = por %p43, %p44
      %p46 = scmp.ne.s32.totalorder %s37, %s38
      %p47 = scmp.eq.s32.totalorder %s32, 0
      %p48 = por %p46, %p47
      %p49 = scmp.ne.s32.totalorder %s37, %s38
      %p50 = scmp.eq.s32.totalorder %s33, 1
      %p51 = por %p49, %p50
      %p53 = scmp.ne.s32.totalorder %s38, %s52
      %p54 = scmp.eq.s32.totalorder %s33, 0
      %p55 = por %p53, %p54
      %s56 = ssub.s32 %s27, %s34
      %p57 = scmp.eq.s32.totalorder %s56, 0
      %s59 = sadd.s32 %s58, 1
      %s60 = scalar_select %p57, %s58, %s59
      %p63 = pneg %p57
      %p64 = scmp.eq.s32.totalorder %s27, 1
      %p65 = por %p63, %p64
      %p66 = scmp.ne.s32.totalorder %s58, %s61
      %p67 = scmp.eq.s32.totalorder %s27, 0
      %p68 = por %p66, %p67
      %p69 = scmp.ne.s32.totalorder %s58, %s61
      %p70 = scmp.eq.s32.totalorder %s32, 1
      %p71 = por %p69, %p70
      %p72 = scmp.ne.s32.totalorder %s61, %s62
      %p73 = scmp.eq.s32.totalorder %s32, 0
      %p74 = por %p72, %p73
      %p75 = scmp.ne.s32.totalorder %s61, %s62
      %p76 = scmp.eq.s32.totalorder %s33, 1
      %p77 = por %p75, %p76
      %p79 = scmp.ne.s32.totalorder %s62, %s78
      %p80 = scmp.eq.s32.totalorder %s33, 0
      %p81 = por %p79, %p80
      %p82 = scmp.le.s32.totalorder 1, %s27
      %p83 = scmp.lt.s32.totalorder %s27, 3
      %p84 = pnand %p82, %p83
      %p85 = pneg %p84
      // Predicated region
      $region9: #{tpu_custom_call.1} parent=5 // pred_check
        _
      $region10: #{tpu_custom_call.1} parent=5 // pred_check_branch
        %87 = sbr.rel (%p84) target = $region12
      $region11: #{tpu_custom_call.1} parent=5 // pred_region
        %s88 = ssub.s32 %s27, 1
        // Predicated region
        $region13: #{tpu_custom_call.1} parent=11 // pred_check
          %p89 = pneg %p48
        $region14: #{tpu_custom_call.1} parent=11 // pred_check_branch
          %91 = sbr.rel (%p89) target = $region16
        $region15: #{tpu_custom_call.1} parent=11 // pred_region
          _
        $region16: #{tpu_custom_call.1} parent=11 // pred_fallthru
          _
      $region12: #{tpu_custom_call.1} parent=5 // pred_fallthru
        _
      %p92 = scmp.lt.s32.totalorder %s27, 2
      // Predicated region
      $region17: #{tpu_custom_call.1} parent=5 // pred_check
        %p93 = pneg %p92
      $region18: #{tpu_custom_call.1} parent=5 // pred_check_branch
        %95 = sbr.rel (%p93) target = $region20
      $region19: #{tpu_custom_call.1} parent=5 // pred_region
        _
      $region20: #{tpu_custom_call.1} parent=5 // pred_fallthru
        _
      %p96 = scmp.le.s32.totalorder 1, %s27
      %p97 = scmp.lt.s32.totalorder %s27, 3
      %p98 = pnand %p96, %p97
      %p99 = pneg %p98
      // Predicated region
      $region21: #{tpu_custom_call.1} parent=5 // pred_check
        _
      $region22: #{tpu_custom_call.1} parent=5 // pred_check_branch
        %101 = sbr.rel (%p98) target = $region24
      $region23: #{tpu_custom_call.1} parent=5 // pred_region
        %s102 = ssub.s32 %s27, 1
        %p103 = pneg %p48
        %p104 = pneg %p45
        %p105 = pneg %p74
        %p106 = pneg %p71
        %s107 = sand.u32 %s61, 1
        %s108 = scalar_lea.sflag [#allocation9], %s107
        %s109 = sand.u32 %s61, 1
        %s110 = smul.addr %s109, 8
        %s111 = scalar_lea.vmem [#allocation8], %s110
        %s112 = smul.u32 %s32, 8
        %s113 = smul.u32 %s112, 128
        %s114 = sld [smem:[#allocation7 + %s113]]
        loop: start=0, step=1, limit=24
        $region25: #{tpu_custom_call.1} parent=23 // loop_pre_header
          _
        $region26: #{tpu_custom_call.1} parent=23 // loop_header
          %s116 = sphi 0, %s120
          %p117 = scmp.ge.s32.totalorder %s116, 24
          %v121 = vphi 0.0, %v137
        $region27: #{tpu_custom_call.1} parent=23 // loop_header_branch
          %119 = sbr.rel (%p117) target = $region31
        $region28: #{tpu_custom_call.1} parent=23 // loop_body
          %s122 = sshra.s32 %s112, 7
          %s123 = sand.u32 %s112, 127
          %s124 = sadd.s32 %s122, %s116
          %s125 = smul.u32 %s124, 128
          %s126 = sshra.s32 %s112, 7
          %s127 = sand.u32 %s112, 127
          %s128 = sadd.s32 %s125, %s127
          %s129 = sld [smem:[#allocation5 + %s128]]
          %s130 = scalar_lea.vmem %s3, %s129
          %v131 = vld [vmem:[%s130] sm:$0x1]
          %p132 = scmp.lt.s32.totalorder %s116, %s114
          %s133 = scalar_select %p132, 1, 0
          %v134 = vstv %s133
          %vm135 = vcmp.eq.s32.totalorder %v134, 1
          %v136 = vsel %vm135, %v131, 0.0
          %v137 = vadd.f32 %v121, %v136
        $region29: #{tpu_custom_call.1} parent=23 // loop_footer
          %s120 = sadd.s32 1, %s116
        $region30: #{tpu_custom_call.1} parent=23 // loop_footer_branch
          %115 = sbr.rel target = $region26
        $region31: #{tpu_custom_call.1} parent=23 // loop_exit
          _
        %s138 = scvt.s32.f32 %s114
        %v139 = vstv %s138
        %v140 = vrcp.pop %v139
        %v141 = vmul.f32 %v121, %v140
        %142 = vst [vmem:[#allocation2] sm:$0x1] %v141
        %s143 = sadd.s32 %s113, 1
        %s144 = sld [smem:[#allocation7 + %s143]]
        loop: start=0, step=1, limit=20
        $region32: #{tpu_custom_call.1} parent=23 // loop_pre_header
          _
        $region33: #{tpu_custom_call.1} parent=23 // loop_header
          %s146 = sphi 0, %s150
          %p147 = scmp.ge.s32.totalorder %s146, 20
          %v151 = vphi 0.0, %v167
        $region34: #{tpu_custom_call.1} parent=23 // loop_header_branch
          %149 = sbr.rel (%p147) target = $region38
        $region35: #{tpu_custom_call.1} parent=23 // loop_body
          %s152 = sshra.s32 %s112, 7
          %s153 = sand.u32 %s112, 127
          %s154 = sadd.s32 %s152, %s146
          %s155 = smul.u32 %s154, 128
          %s156 = sshra.s32 %s112, 7
          %s157 = sand.u32 %s112, 127
          %s158 = sadd.s32 %s155, %s157
          %s159 = sld [smem:[#allocation6 + %s158]]
          %s160 = scalar_lea.vmem %s3, %s159
          %v161 = vld [vmem:[%s160] sm:$0x1]
          %p162 = scmp.lt.s32.totalorder %s146, %s144
          %s163 = scalar_select %p162, 1, 0
          %v164 = vstv %s163
          %vm165 = vcmp.eq.s32.totalorder %v164, 1
          %v166 = vsel %vm165, %v161, 0.0
          %v167 = vadd.f32 %v151, %v166
        $region36: #{tpu_custom_call.1} parent=23 // loop_footer
          %s150 = sadd.s32 1, %s146
        $region37: #{tpu_custom_call.1} parent=23 // loop_footer_branch
          %145 = sbr.rel target = $region33
        $region38: #{tpu_custom_call.1} parent=23 // loop_exit
          _
        %s168 = scvt.s32.f32 %s144
        %v169 = vstv %s168
        %v170 = vrcp.pop %v169
        %v171 = vmul.f32 %v151, %v170
        %172 = vst [vmem:[#allocation3] sm:$0x1] %v171
        %s173 = sadd.s32 %s112, 1
        %s174 = smul.u32 %s173, 128
        %s175 = sld [smem:[#allocation7 + %s174]]
        loop: start=0, step=1, limit=24
        $region39: #{tpu_custom_call.1} parent=23 // loop_pre_header
          _
        $region40: #{tpu_custom_call.1} parent=23 // loop_header
          %s177 = sphi 0, %s181
          %p178 = scmp.ge.s32.totalorder %s177, 24
          %v182 = vphi 0.0, %v198
        $region41: #{tpu_custom_call.1} parent=23 // loop_header_branch
          %180 = sbr.rel (%p178) target = $region45
        $region42: #{tpu_custom_call.1} parent=23 // loop_body
          %s183 = sshra.s32 %s173, 7
          %s184 = sand.u32 %s173, 127
          %s185 = sadd.s32 %s183, %s177
          %s186 = smul.u32 %s185, 128
          %s187 = sshra.s32 %s173, 7
          %s188 = sand.u32 %s173, 127
          %s189 = sadd.s32 %s186, %s188
          %s190 = sld [smem:[#allocation5 + %s189]]
          %s191 = scalar_lea.vmem %s3, %s190
          %v192 = vld [vmem:[%s191] sm:$0x1]
          %p193 = scmp.lt.s32.totalorder %s177, %s175
          %s194 = scalar_select %p193, 1, 0
          %v195 = vstv %s194
          %vm196 = vcmp.eq.s32.totalorder %v195, 1
          %v197 = vsel %vm196, %v192, 0.0
          %v198 = vadd.f32 %v182, %v197
        $region43: #{tpu_custom_call.1} parent=23 // loop_footer
          %s181 = sadd.s32 1, %s177
        $region44: #{tpu_custom_call.1} parent=23 // loop_footer_branch
          %176 = sbr.rel target = $region40
        $region45: #{tpu_custom_call.1} parent=23 // loop_exit
          _
        %s199 = scvt.s32.f32 %s175
        %v200 = vstv %s199
        %v201 = vrcp.pop %v200
        %v202 = vmul.f32 %v182, %v201
        %203 = vst [vmem:[#allocation2 + $0x1] sm:$0x1] %v202
        %s204 = sadd.s32 %s174, 1
        %s205 = sld [smem:[#allocation7 + %s204]]
        loop: start=0, step=1, limit=20
        $region46: #{tpu_custom_call.1} parent=23 // loop_pre_header
          _
        $region47: #{tpu_custom_call.1} parent=23 // loop_header
          %s207 = sphi 0, %s211
          %p208 = scmp.ge.s32.totalorder %s207, 20
          %v212 = vphi 0.0, %v228
        $region48: #{tpu_custom_call.1} parent=23 // loop_header_branch
          %210 = sbr.rel (%p208) target = $region52
        $region49: #{tpu_custom_call.1} parent=23 // loop_body
          %s213 = sshra.s32 %s173, 7
          %s214 = sand.u32 %s173, 127
          %s215 = sadd.s32 %s213, %s207
          %s216 = smul.u32 %s215, 128
          %s217 = sshra.s32 %s173, 7
          %s218 = sand.u32 %s173, 127
          %s219 = sadd.s32 %s216, %s218
          %s220 = sld [smem:[#allocation6 + %s219]]
          %s221 = scalar_lea.vmem %s3, %s220
          %v222 = vld [vmem:[%s221] sm:$0x1]
          %p223 = scmp.lt.s32.totalorder %s207, %s205
          %s224 = scalar_select %p223, 1, 0
          %v225 = vstv %s224
          %vm226 = vcmp.eq.s32.totalorder %v225, 1
          %v227 = vsel %vm226, %v222, 0.0
          %v228 = vadd.f32 %v212, %v227
        $region50: #{tpu_custom_call.1} parent=23 // loop_footer
          %s211 = sadd.s32 1, %s207
        $region51: #{tpu_custom_call.1} parent=23 // loop_footer_branch
          %206 = sbr.rel target = $region47
        $region52: #{tpu_custom_call.1} parent=23 // loop_exit
          _
        %s229 = scvt.s32.f32 %s205
        %v230 = vstv %s229
        %v231 = vrcp.pop %v230
        %v232 = vmul.f32 %v212, %v231
        %233 = vst [vmem:[#allocation3 + $0x1] sm:$0x1] %v232
        %s234 = sadd.s32 %s112, 2
        %s235 = smul.u32 %s234, 128
        %s236 = sld [smem:[#allocation7 + %s235]]
        loop: start=0, step=1, limit=24
        $region53: #{tpu_custom_call.1} parent=23 // loop_pre_header
          _
        $region54: #{tpu_custom_call.1} parent=23 // loop_header
          %s238 = sphi 0, %s242
          %p239 = scmp.ge.s32.totalorder %s238, 24
          %v243 = vphi 0.0, %v259
        $region55: #{tpu_custom_call.1} parent=23 // loop_header_branch
          %241 = sbr.rel (%p239) target = $region59
        $region56: #{tpu_custom_call.1} parent=23 // loop_body
          %s244 = sshra.s32 %s234, 7
          %s245 = sand.u32 %s234, 127
          %s246 = sadd.s32 %s244, %s238
          %s247 = smul.u32 %s246, 128
          %s248 = sshra.s32 %s234, 7
          %s249 = sand.u32 %s234, 127
          %s250 = sadd.s32 %s247, %s249
          %s251 = sld [smem:[#allocation5 + %s250]]
          %s252 = scalar_lea.vmem %s3, %s251
          %v253 = vld [vmem:[%s252] sm:$0x1]
          %p254 = scmp.lt.s32.totalorder %s238, %s236
          %s255 = scalar_select %p254, 1, 0
          %v256 = vstv %s255
          %vm257 = vcmp.eq.s32.totalorder %v256, 1
          %v258 = vsel %vm257, %v253, 0.0
          %v259 = vadd.f32 %v243, %v258
        $region57: #{tpu_custom_call.1} parent=23 // loop_footer
          %s242 = sadd.s32 1, %s238
        $region58: #{tpu_custom_call.1} parent=23 // loop_footer_branch
          %237 = sbr.rel target = $region54
        $region59: #{tpu_custom_call.1} parent=23 // loop_exit
          _
        %s260 = scvt.s32.f32 %s236
        %v261 = vstv %s260
        %v262 = vrcp.pop %v261
        %v263 = vmul.f32 %v243, %v262
        %264 = vst [vmem:[#allocation2 + $0x2] sm:$0x1] %v263
        %s265 = sadd.s32 %s235, 1
        %s266 = sld [smem:[#allocation7 + %s265]]
        loop: start=0, step=1, limit=20
        $region60: #{tpu_custom_call.1} parent=23 // loop_pre_header
          _
        $region61: #{tpu_custom_call.1} parent=23 // loop_header
          %s268 = sphi 0, %s272
          %p269 = scmp.ge.s32.totalorder %s268, 20
          %v273 = vphi 0.0, %v289
        $region62: #{tpu_custom_call.1} parent=23 // loop_header_branch
          %271 = sbr.rel (%p269) target = $region66
        $region63: #{tpu_custom_call.1} parent=23 // loop_body
          %s274 = sshra.s32 %s234, 7
          %s275 = sand.u32 %s234, 127
          %s276 = sadd.s32 %s274, %s268
          %s277 = smul.u32 %s276, 128
          %s278 = sshra.s32 %s234, 7
          %s279 = sand.u32 %s234, 127
          %s280 = sadd.s32 %s277, %s279
          %s281 = sld [smem:[#allocation6 + %s280]]
          %s282 = scalar_lea.vmem %s3, %s281
          %v283 = vld [vmem:[%s282] sm:$0x1]
          %p284 = scmp.lt.s32.totalorder %s268, %s266
          %s285 = scalar_select %p284, 1, 0
          %v286 = vstv %s285
          %vm287 = vcmp.eq.s32.totalorder %v286, 1
          %v288 = vsel %vm287, %v283, 0.0
          %v289 = vadd.f32 %v273, %v288
        $region64: #{tpu_custom_call.1} parent=23 // loop_footer
          %s272 = sadd.s32 1, %s268
        $region65: #{tpu_custom_call.1} parent=23 // loop_footer_branch
          %267 = sbr.rel target = $region61
        $region66: #{tpu_custom_call.1} parent=23 // loop_exit
          _
        %s290 = scvt.s32.f32 %s266
        %v291 = vstv %s290
        %v292 = vrcp.pop %v291
        %v293 = vmul.f32 %v273, %v292
        %294 = vst [vmem:[#allocation3 + $0x2] sm:$0x1] %v293
        %s295 = sadd.s32 %s112, 3
        %s296 = smul.u32 %s295, 128
        %s297 = sld [smem:[#allocation7 + %s296]]
        loop: start=0, step=1, limit=24
        $region67: #{tpu_custom_call.1} parent=23 // loop_pre_header
          _
        $region68: #{tpu_custom_call.1} parent=23 // loop_header
          %s299 = sphi 0, %s303
          %p300 = scmp.ge.s32.totalorder %s299, 24
          %v304 = vphi 0.0, %v320
        $region69: #{tpu_custom_call.1} parent=23 // loop_header_branch
          %302 = sbr.rel (%p300) target = $region73
        $region70: #{tpu_custom_call.1} parent=23 // loop_body
          %s305 = sshra.s32 %s295, 7
          %s306 = sand.u32 %s295, 127
          %s307 = sadd.s32 %s305, %s299
          %s308 = smul.u32 %s307, 128
          %s309 = sshra.s32 %s295, 7
          %s310 = sand.u32 %s295, 127
          %s311 = sadd.s32 %s308, %s310
          %s312 = sld [smem:[#allocation5 + %s311]]
          %s313 = scalar_lea.vmem %s3, %s312
          %v314 = vld [vmem:[%s313] sm:$0x1]
          %p315 = scmp.lt.s32.totalorder %s299, %s297
          %s316 = scalar_select %p315, 1, 0
          %v317 = vstv %s316
          %vm318 = vcmp.eq.s32.totalorder %v317, 1
          %v319 = vsel %vm318, %v314, 0.0
          %v320 = vadd.f32 %v304, %v319
        $region71: #{tpu_custom_call.1} parent=23 // loop_footer
          %s303 = sadd.s32 1, %s299
        $region72: #{tpu_custom_call.1} parent=23 // loop_footer_branch
          %298 = sbr.rel target = $region68
        $region73: #{tpu_custom_call.1} parent=23 // loop_exit
          _
        %s321 = scvt.s32.f32 %s297
        %v322 = vstv %s321
        %v323 = vrcp.pop %v322
        %v324 = vmul.f32 %v304, %v323
        %325 = vst [vmem:[#allocation2 + $0x3] sm:$0x1] %v324
        %s326 = sadd.s32 %s296, 1
        %s327 = sld [smem:[#allocation7 + %s326]]
        loop: start=0, step=1, limit=20
        $region74: #{tpu_custom_call.1} parent=23 // loop_pre_header
          _
        $region75: #{tpu_custom_call.1} parent=23 // loop_header
          %s329 = sphi 0, %s333
          %p330 = scmp.ge.s32.totalorder %s329, 20
          %v334 = vphi 0.0, %v350
        $region76: #{tpu_custom_call.1} parent=23 // loop_header_branch
          %332 = sbr.rel (%p330) target = $region80
        $region77: #{tpu_custom_call.1} parent=23 // loop_body
          %s335 = sshra.s32 %s295, 7
          %s336 = sand.u32 %s295, 127
          %s337 = sadd.s32 %s335, %s329
          %s338 = smul.u32 %s337, 128
          %s339 = sshra.s32 %s295, 7
          %s340 = sand.u32 %s295, 127
          %s341 = sadd.s32 %s338, %s340
          %s342 = sld [smem:[#allocation6 + %s341]]
          %s343 = scalar_lea.vmem %s3, %s342
          %v344 = vld [vmem:[%s343] sm:$0x1]
          %p345 = scmp.lt.s32.totalorder %s329, %s327
          %s346 = scalar_select %p345, 1, 0
          %v347 = vstv %s346
          %vm348 = vcmp.eq.s32.totalorder %v347, 1
          %v349 = vsel %vm348, %v344, 0.0
          %v350 = vadd.f32 %v334, %v349
        $region78: #{tpu_custom_call.1} parent=23 // loop_footer
          %s333 = sadd.s32 1, %s329
        $region79: #{tpu_custom_call.1} parent=23 // loop_footer_branch
          %328 = sbr.rel target = $region75
        $region80: #{tpu_custom_call.1} parent=23 // loop_exit
          _
        %s351 = scvt.s32.f32 %s327
        %v352 = vstv %s351
        %v353 = vrcp.pop %v352
        %v354 = vmul.f32 %v334, %v353
        %355 = vst [vmem:[#allocation3 + $0x3] sm:$0x1] %v354
        %s356 = sadd.s32 %s112, 4
        %s357 = smul.u32 %s356, 128
        %s358 = sld [smem:[#allocation7 + %s357]]
        loop: start=0, step=1, limit=24
        $region81: #{tpu_custom_call.1} parent=23 // loop_pre_header
          _
        $region82: #{tpu_custom_call.1} parent=23 // loop_header
          %s360 = sphi 0, %s364
          %p361 = scmp.ge.s32.totalorder %s360, 24
          %v365 = vphi 0.0, %v381
        $region83: #{tpu_custom_call.1} parent=23 // loop_header_branch
          %363 = sbr.rel (%p361) target = $region87
        $region84: #{tpu_custom_call.1} parent=23 // loop_body
          %s366 = sshra.s32 %s356, 7
          %s367 = sand.u32 %s356, 127
          %s368 = sadd.s32 %s366, %s360
          %s369 = smul.u32 %s368, 128
          %s370 = sshra.s32 %s356, 7
          %s371 = sand.u32 %s356, 127
          %s372 = sadd.s32 %s369, %s371
          %s373 = sld [smem:[#allocation5 + %s372]]
          %s374 = scalar_lea.vmem %s3, %s373
          %v375 = vld [vmem:[%s374] sm:$0x1]
          %p376 = scmp.lt.s32.totalorder %s360, %s358
          %s377 = scalar_select %p376, 1, 0
          %v378 = vstv %s377
          %vm379 = vcmp.eq.s32.totalorder %v378, 1
          %v380 = vsel %vm379, %v375, 0.0
          %v381 = vadd.f32 %v365, %v380
        $region85: #{tpu_custom_call.1} parent=23 // loop_footer
          %s364 = sadd.s32 1, %s360
        $region86: #{tpu_custom_call.1} parent=23 // loop_footer_branch
          %359 = sbr.rel target = $region82
        $region87: #{tpu_custom_call.1} parent=23 // loop_exit
          _
        %s382 = scvt.s32.f32 %s358
        %v383 = vstv %s382
        %v384 = vrcp.pop %v383
        %v385 = vmul.f32 %v365, %v384
        %386 = vst [vmem:[#allocation2 + $0x4] sm:$0x1] %v385
        %s387 = sadd.s32 %s357, 1
        %s388 = sld [smem:[#allocation7 + %s387]]
        loop: start=0, step=1, limit=20
        $region88: #{tpu_custom_call.1} parent=23 // loop_pre_header
          _
        $region89: #{tpu_custom_call.1} parent=23 // loop_header
          %s390 = sphi 0, %s394
          %p391 = scmp.ge.s32.totalorder %s390, 20
          %v395 = vphi 0.0, %v411
        $region90: #{tpu_custom_call.1} parent=23 // loop_header_branch
          %393 = sbr.rel (%p391) target = $region94
        $region91: #{tpu_custom_call.1} parent=23 // loop_body
          %s396 = sshra.s32 %s356, 7
          %s397 = sand.u32 %s356, 127
          %s398 = sadd.s32 %s396, %s390
          %s399 = smul.u32 %s398, 128
          %s400 = sshra.s32 %s356, 7
          %s401 = sand.u32 %s356, 127
          %s402 = sadd.s32 %s399, %s401
          %s403 = sld [smem:[#allocation6 + %s402]]
          %s404 = scalar_lea.vmem %s3, %s403
          %v405 = vld [vmem:[%s404] sm:$0x1]
          %p406 = scmp.lt.s32.totalorder %s390, %s388
          %s407 = scalar_select %p406, 1, 0
          %v408 = vstv %s407
          %vm409 = vcmp.eq.s32.totalorder %v408, 1
          %v410 = vsel %vm409, %v405, 0.0
          %v411 = vadd.f32 %v395, %v410
        $region92: #{tpu_custom_call.1} parent=23 // loop_footer
          %s394 = sadd.s32 1, %s390
        $region93: #{tpu_custom_call.1} parent=23 // loop_footer_branch
          %389 = sbr.rel target = $region89
        $region94: #{tpu_custom_call.1} parent=23 // loop_exit
          _
        %s412 = scvt.s32.f32 %s388
        %v413 = vstv %s412
        %v414 = vrcp.pop %v413
        %v415 = vmul.f32 %v395, %v414
        %416 = vst [vmem:[#allocation3 + $0x4] sm:$0x1] %v415
        %s417 = sadd.s32 %s112, 5
        %s418 = smul.u32 %s417, 128
        %s419 = sld [smem:[#allocation7 + %s418]]
        loop: start=0, step=1, limit=24
        $region95: #{tpu_custom_call.1} parent=23 // loop_pre_header
          _
        $region96: #{tpu_custom_call.1} parent=23 // loop_header
          %s421 = sphi 0, %s425
          %p422 = scmp.ge.s32.totalorder %s421, 24
          %v426 = vphi 0.0, %v442
        $region97: #{tpu_custom_call.1} parent=23 // loop_header_branch
          %424 = sbr.rel (%p422) target = $region101
        $region98: #{tpu_custom_call.1} parent=23 // loop_body
          %s427 = sshra.s32 %s417, 7
          %s428 = sand.u32 %s417, 127
          %s429 = sadd.s32 %s427, %s421
          %s430 = smul.u32 %s429, 128
          %s431 = sshra.s32 %s417, 7
          %s432 = sand.u32 %s417, 127
          %s433 = sadd.s32 %s430, %s432
          %s434 = sld [smem:[#allocation5 + %s433]]
          %s435 = scalar_lea.vmem %s3, %s434
          %v436 = vld [vmem:[%s435] sm:$0x1]
          %p437 = scmp.lt.s32.totalorder %s421, %s419
          %s438 = scalar_select %p437, 1, 0
          %v439 = vstv %s438
          %vm440 = vcmp.eq.s32.totalorder %v439, 1
          %v441 = vsel %vm440, %v436, 0.0
          %v442 = vadd.f32 %v426, %v441
        $region99: #{tpu_custom_call.1} parent=23 // loop_footer
          %s425 = sadd.s32 1, %s421
        $region100: #{tpu_custom_call.1} parent=23 // loop_footer_branch
          %420 = sbr.rel target = $region96
        $region101: #{tpu_custom_call.1} parent=23 // loop_exit
          _
        %s443 = scvt.s32.f32 %s419
        %v444 = vstv %s443
        %v445 = vrcp.pop %v444
        %v446 = vmul.f32 %v426, %v445
        %447 = vst [vmem:[#allocation2 + $0x5] sm:$0x1] %v446
        %s448 = sadd.s32 %s418, 1
        %s449 = sld [smem:[#allocation7 + %s448]]
        loop: start=0, step=1, limit=20
        $region102: #{tpu_custom_call.1} parent=23 // loop_pre_header
          _
        $region103: #{tpu_custom_call.1} parent=23 // loop_header
          %s451 = sphi 0, %s455
          %p452 = scmp.ge.s32.totalorder %s451, 20
          %v456 = vphi 0.0, %v472
        $region104: #{tpu_custom_call.1} parent=23 // loop_header_branch
          %454 = sbr.rel (%p452) target = $region108
        $region105: #{tpu_custom_call.1} parent=23 // loop_body
          %s457 = sshra.s32 %s417, 7
          %s458 = sand.u32 %s417, 127
          %s459 = sadd.s32 %s457, %s451
          %s460 = smul.u32 %s459, 128
          %s461 = sshra.s32 %s417, 7
          %s462 = sand.u32 %s417, 127
          %s463 = sadd.s32 %s460, %s462
          %s464 = sld [smem:[#allocation6 + %s463]]
          %s465 = scalar_lea.vmem %s3, %s464
          %v466 = vld [vmem:[%s465] sm:$0x1]
          %p467 = scmp.lt.s32.totalorder %s451, %s449
          %s468 = scalar_select %p467, 1, 0
          %v469 = vstv %s468
          %vm470 = vcmp.eq.s32.totalorder %v469, 1
          %v471 = vsel %vm470, %v466, 0.0
          %v472 = vadd.f32 %v456, %v471
        $region106: #{tpu_custom_call.1} parent=23 // loop_footer
          %s455 = sadd.s32 1, %s451
        $region107: #{tpu_custom_call.1} parent=23 // loop_footer_branch
          %450 = sbr.rel target = $region103
        $region108: #{tpu_custom_call.1} parent=23 // loop_exit
          _
        %s473 = scvt.s32.f32 %s449
        %v474 = vstv %s473
        %v475 = vrcp.pop %v474
        %v476 = vmul.f32 %v456, %v475
        %477 = vst [vmem:[#allocation3 + $0x5] sm:$0x1] %v476
        %s478 = sadd.s32 %s112, 6
        %s479 = smul.u32 %s478, 128
        %s480 = sld [smem:[#allocation7 + %s479]]
        loop: start=0, step=1, limit=24
        $region109: #{tpu_custom_call.1} parent=23 // loop_pre_header
          _
        $region110: #{tpu_custom_call.1} parent=23 // loop_header
          %s482 = sphi 0, %s486
          %p483 = scmp.ge.s32.totalorder %s482, 24
          %v487 = vphi 0.0, %v503
        $region111: #{tpu_custom_call.1} parent=23 // loop_header_branch
          %485 = sbr.rel (%p483) target = $region115
        $region112: #{tpu_custom_call.1} parent=23 // loop_body
          %s488 = sshra.s32 %s478, 7
          %s489 = sand.u32 %s478, 127
          %s490 = sadd.s32 %s488, %s482
          %s491 = smul.u32 %s490, 128
          %s492 = sshra.s32 %s478, 7
          %s493 = sand.u32 %s478, 127
          %s494 = sadd.s32 %s491, %s493
          %s495 = sld [smem:[#allocation5 + %s494]]
          %s496 = scalar_lea.vmem %s3, %s495
          %v497 = vld [vmem:[%s496] sm:$0x1]
          %p498 = scmp.lt.s32.totalorder %s482, %s480
          %s499 = scalar_select %p498, 1, 0
          %v500 = vstv %s499
          %vm501 = vcmp.eq.s32.totalorder %v500, 1
          %v502 = vsel %vm501, %v497, 0.0
          %v503 = vadd.f32 %v487, %v502
        $region113: #{tpu_custom_call.1} parent=23 // loop_footer
          %s486 = sadd.s32 1, %s482
        $region114: #{tpu_custom_call.1} parent=23 // loop_footer_branch
          %481 = sbr.rel target = $region110
        $region115: #{tpu_custom_call.1} parent=23 // loop_exit
          _
        %s504 = scvt.s32.f32 %s480
        %v505 = vstv %s504
        %v506 = vrcp.pop %v505
        %v507 = vmul.f32 %v487, %v506
        %508 = vst [vmem:[#allocation2 + $0x6] sm:$0x1] %v507
        %s509 = sadd.s32 %s479, 1
        %s510 = sld [smem:[#allocation7 + %s509]]
        loop: start=0, step=1, limit=20
        $region116: #{tpu_custom_call.1} parent=23 // loop_pre_header
          _
        $region117: #{tpu_custom_call.1} parent=23 // loop_header
          %s512 = sphi 0, %s516
          %p513 = scmp.ge.s32.totalorder %s512, 20
          %v517 = vphi 0.0, %v533
        $region118: #{tpu_custom_call.1} parent=23 // loop_header_branch
          %515 = sbr.rel (%p513) target = $region122
        $region119: #{tpu_custom_call.1} parent=23 // loop_body
          %s518 = sshra.s32 %s478, 7
          %s519 = sand.u32 %s478, 127
          %s520 = sadd.s32 %s518, %s512
          %s521 = smul.u32 %s520, 128
          %s522 = sshra.s32 %s478, 7
          %s523 = sand.u32 %s478, 127
          %s524 = sadd.s32 %s521, %s523
          %s525 = sld [smem:[#allocation6 + %s524]]
          %s526 = scalar_lea.vmem %s3, %s525
          %v527 = vld [vmem:[%s526] sm:$0x1]
          %p528 = scmp.lt.s32.totalorder %s512, %s510
          %s529 = scalar_select %p528, 1, 0
          %v530 = vstv %s529
          %vm531 = vcmp.eq.s32.totalorder %v530, 1
          %v532 = vsel %vm531, %v527, 0.0
          %v533 = vadd.f32 %v517, %v532
        $region120: #{tpu_custom_call.1} parent=23 // loop_footer
          %s516 = sadd.s32 1, %s512
        $region121: #{tpu_custom_call.1} parent=23 // loop_footer_branch
          %511 = sbr.rel target = $region117
        $region122: #{tpu_custom_call.1} parent=23 // loop_exit
          _
        %s534 = scvt.s32.f32 %s510
        %v535 = vstv %s534
        %v536 = vrcp.pop %v535
        %v537 = vmul.f32 %v517, %v536
        %538 = vst [vmem:[#allocation3 + $0x6] sm:$0x1] %v537
        %s539 = sadd.s32 %s112, 7
        %s540 = smul.u32 %s539, 128
        %s541 = sld [smem:[#allocation7 + %s540]]
        loop: start=0, step=1, limit=24
        $region123: #{tpu_custom_call.1} parent=23 // loop_pre_header
          _
        $region124: #{tpu_custom_call.1} parent=23 // loop_header
          %s543 = sphi 0, %s547
          %p544 = scmp.ge.s32.totalorder %s543, 24
          %v548 = vphi 0.0, %v564
        $region125: #{tpu_custom_call.1} parent=23 // loop_header_branch
          %546 = sbr.rel (%p544) target = $region129
        $region126: #{tpu_custom_call.1} parent=23 // loop_body
          %s549 = sshra.s32 %s539, 7
          %s550 = sand.u32 %s539, 127
          %s551 = sadd.s32 %s549, %s543
          %s552 = smul.u32 %s551, 128
          %s553 = sshra.s32 %s539, 7
          %s554 = sand.u32 %s539, 127
          %s555 = sadd.s32 %s552, %s554
          %s556 = sld [smem:[#allocation5 + %s555]]
          %s557 = scalar_lea.vmem %s3, %s556
          %v558 = vld [vmem:[%s557] sm:$0x1]
          %p559 = scmp.lt.s32.totalorder %s543, %s541
          %s560 = scalar_select %p559, 1, 0
          %v561 = vstv %s560
          %vm562 = vcmp.eq.s32.totalorder %v561, 1
          %v563 = vsel %vm562, %v558, 0.0
          %v564 = vadd.f32 %v548, %v563
        $region127: #{tpu_custom_call.1} parent=23 // loop_footer
          %s547 = sadd.s32 1, %s543
        $region128: #{tpu_custom_call.1} parent=23 // loop_footer_branch
          %542 = sbr.rel target = $region124
        $region129: #{tpu_custom_call.1} parent=23 // loop_exit
          _
        %s565 = scvt.s32.f32 %s541
        %v566 = vstv %s565
        %v567 = vrcp.pop %v566
        %v568 = vmul.f32 %v548, %v567
        %569 = vst [vmem:[#allocation2 + $0x7] sm:$0x1] %v568
        %s570 = sadd.s32 %s540, 1
        %s571 = sld [smem:[#allocation7 + %s570]]
        loop: start=0, step=1, limit=20
        $region130: #{tpu_custom_call.1} parent=23 // loop_pre_header
          _
        $region131: #{tpu_custom_call.1} parent=23 // loop_header
          %s573 = sphi 0, %s577
          %p574 = scmp.ge.s32.totalorder %s573, 20
          %v578 = vphi 0.0, %v594
        $region132: #{tpu_custom_call.1} parent=23 // loop_header_branch
          %576 = sbr.rel (%p574) target = $region136
        $region133: #{tpu_custom_call.1} parent=23 // loop_body
          %s579 = sshra.s32 %s539, 7
          %s580 = sand.u32 %s539, 127
          %s581 = sadd.s32 %s579, %s573
          %s582 = smul.u32 %s581, 128
          %s583 = sshra.s32 %s539, 7
          %s584 = sand.u32 %s539, 127
          %s585 = sadd.s32 %s582, %s584
          %s586 = sld [smem:[#allocation6 + %s585]]
          %s587 = scalar_lea.vmem %s3, %s586
          %v588 = vld [vmem:[%s587] sm:$0x1]
          %p589 = scmp.lt.s32.totalorder %s573, %s571
          %s590 = scalar_select %p589, 1, 0
          %v591 = vstv %s590
          %vm592 = vcmp.eq.s32.totalorder %v591, 1
          %v593 = vsel %vm592, %v588, 0.0
          %v594 = vadd.f32 %v578, %v593
        $region134: #{tpu_custom_call.1} parent=23 // loop_footer
          %s577 = sadd.s32 1, %s573
        $region135: #{tpu_custom_call.1} parent=23 // loop_footer_branch
          %572 = sbr.rel target = $region131
        $region136: #{tpu_custom_call.1} parent=23 // loop_exit
          _
        %s595 = scvt.s32.f32 %s571
        %v596 = vstv %s595
        %v597 = vrcp.pop %v596
        %v598 = vmul.f32 %v578, %v597
        %599 = vst [vmem:[#allocation3 + $0x7] sm:$0x1] %v598
        %v600 = vld [vmem:[#allocation2] sm:$0xff]
        %v601 = vld [vmem:[#allocation3] sm:$0xff]
        %v602 = vmul.f32 %v600, %v601
        %603 = vadd.xlane.f32.xlu0 %v602
        %v604 = vpop.xlane.xlu0 %603
        %v605 = vmul.f32 %v600, %v600
        %606 = vadd.xlane.f32.xlu0 %v605
        %v607 = vpop.xlane.xlu0 %606
        %v608 = vrsqrt.pop %v607
        %v609 = vmul.f32 %v607, %v608
        %vm610 = vcmp.eq.f32.partialorder %v607, inf
        %v611 = vsel %vm610, %v607, %v609
        %vm612 = vcmp.eq.f32.partialorder %v607, 0.0
        %v613 = vand.u32 %v607, 2147483648
        %v614 = vsel %vm612, %v613, %v611
        %v615 = vmul.f32 %v601, %v601
        %616 = vadd.xlane.f32.xlu0 %v615
        %v617 = vpop.xlane.xlu0 %616
        %v618 = vrsqrt.pop %v617
        %v619 = vmul.f32 %v617, %v618
        %vm620 = vcmp.eq.f32.partialorder %v617, inf
        %v621 = vsel %vm620, %v617, %v619
        %vm622 = vcmp.eq.f32.partialorder %v617, 0.0
        %v623 = vand.u32 %v617, 2147483648
        %v624 = vsel %vm622, %v623, %v621
        %v625 = vmul.f32 %v614, %v624
        %v626 = vmax.f32 %v625, 1e-08
        %v627 = vrcp.pop %v626
        %v628 = vmul.f32 %v604, %v627
        %v629 = vmul.f32 %v628, 5.0
        %630 = vst [vmem:[%s111] sm:$0xff] %v629
        %s631 = sand.u32 %s61, 1
        %s632 = scalar_lea.sflag [#allocation9], %s631
        %s633 = sand.u32 %s61, 1
        %s634 = smul.addr %s633, 8
        %s635 = scalar_lea.vmem [#allocation8], %s634
        // Predicated region
        $region137: #{tpu_custom_call.1} parent=23 // pred_check
          %p636 = pneg %p71
        $region138: #{tpu_custom_call.1} parent=23 // pred_check_branch
          %638 = sbr.rel (%p636) target = $region140
        $region139: #{tpu_custom_call.1} parent=23 // pred_region
          %s640 = ssub.s32 128, 128
          %641 = vsyncadd %s632, %s640
          %s642 = smul.addr %s32, 128
          %s643 = scalar_lea.hbm %s4, %s642
          %s645 = sshll.u32 %s635, 4
          %s646 = int_to_ptr.vmem [resolvable:$true] %s645
          %648 = dma.vmem_to_hbm [thread:$0]  %s646, 128, %s643, %s632
        $region140: #{tpu_custom_call.1} parent=23 // pred_fallthru
          _
      $region24: #{tpu_custom_call.1} parent=5 // pred_fallthru
        _
      %p649 = scmp.le.s32.totalorder 2, %s27
      // Predicated region
      $region141: #{tpu_custom_call.1} parent=5 // pred_check
        %p650 = pneg %p649
      $region142: #{tpu_custom_call.1} parent=5 // pred_check_branch
        %652 = sbr.rel (%p650) target = $region144
      $region143: #{tpu_custom_call.1} parent=5 // pred_region
        %s653 = ssub.s32 %s27, 2
        // Predicated region
        $region145: #{tpu_custom_call.1} parent=143 // pred_check
          %p654 = pneg %p77
        $region146: #{tpu_custom_call.1} parent=143 // pred_check_branch
          %656 = sbr.rel (%p654) target = $region148
        $region147: #{tpu_custom_call.1} parent=143 // pred_region
          %s657 = sand.u32 %s62, 1
          %s658 = scalar_lea.sflag [#allocation9], %s657
          %s659 = sand.u32 %s62, 1
          %s660 = smul.addr %s659, 8
          %s661 = scalar_lea.vmem [#allocation8], %s660
          %662 = dma.done %s658, 128
        $region148: #{tpu_custom_call.1} parent=143 // pred_fallthru
          _
      $region144: #{tpu_custom_call.1} parent=5 // pred_fallthru
        _
    $region6: #{tpu_custom_call.1} parent=1 // loop_footer
      %s31 = sadd.s32 1, %s27
    $region7: #{tpu_custom_call.1} parent=1 // loop_footer_branch
      %26 = sbr.rel target = $region3
    $region8: #{tpu_custom_call.1} parent=1 // loop_exit
      _
    %663 = vsyncpa [#allocation9], 1
    %s664 = scalar_lea.sflag [#allocation9], 1
    %665 = vsyncpa %s664, 1

</llo_original>
